<compile_context>
chip_gen: v5e
topology: v5e:2x2
jax: 0.10.0
libtpu: 0.0.40
codegen_flags: <defaults>
</compile_context>

<pallas_src>
import functools

import numpy as np
import jax
import jax.numpy as jnp
from jax.experimental import pallas as pl
from jax.experimental.pallas import tpu as pltpu


def _round_up(x, m):
    return (x + m - 1) // m * m


# ----------------------------------------------------------------------------
# Kernel 1: fused conv1 + conv2 + conv3 (BN folded, ReLU), per-sample grid.
# ----------------------------------------------------------------------------
def _conv_stack_kernel(col1_ref, w1_ref, b1_ref,
                       s2_ref, w2_ref, b2_ref,
                       s3_ref, w3_ref, b3_ref, o_ref):
    # conv1: host im2col of the raw input -> one small matmul.   (S1, 9) @ (9, 16)
    a1 = jnp.dot(col1_ref[0], w1_ref[...], preferred_element_type=jnp.float32)
    a1 = jnp.maximum(a1 + b1_ref[...], 0.0)

    # conv2: 3x3 stride-2 gather expressed as 9 selection matmuls, accumulated in VMEM.
    a2 = jnp.zeros((s2_ref.shape[1], w2_ref.shape[2]), jnp.float32)
    for t in range(9):
        a2 = a2 + jnp.dot(
            jnp.dot(s2_ref[t], a1, preferred_element_type=jnp.float32),
            w2_ref[t], preferred_element_type=jnp.float32)
    a2 = jnp.maximum(a2 + b2_ref[...], 0.0)

    # conv3: same scheme.
    a3 = jnp.zeros((s3_ref.shape[1], w3_ref.shape[2]), jnp.float32)
    for t in range(9):
        a3 = a3 + jnp.dot(
            jnp.dot(s3_ref[t], a2, preferred_element_type=jnp.float32),
            w3_ref[t], preferred_element_type=jnp.float32)
    a3 = jnp.maximum(a3 + b3_ref[...], 0.0)

    o_ref[0] = a3                                    # (S3, 64), channels-last


def conv_stack(col1, prep):
    B, S1, _ = col1.shape
    S3o = prep["S3"].shape[1]
    C3 = prep["w3"].shape[2]

    def full(arr):
        shape = arr.shape
        return pl.BlockSpec(shape, lambda b, _s=shape: (0,) * len(_s))

    return pl.pallas_call(
        _conv_stack_kernel,
        out_shape=jax.ShapeDtypeStruct((B, S3o, C3), jnp.float32),
        grid=(B,),
        in_specs=[
            pl.BlockSpec((1, S1, 9), lambda b: (b, 0, 0)),
            full(prep["w1"]), full(prep["b1"]),
            full(prep["S2"]), full(prep["w2"]), full(prep["b2"]),
            full(prep["S3"]), full(prep["w3"]), full(prep["b3"]),
        ],
        out_specs=pl.BlockSpec((1, S3o, C3), lambda b: (b, 0, 0)),
        compiler_params=pltpu.CompilerParams(dimension_semantics=("parallel",)),
    )(col1, prep["w1"], prep["b1"], prep["S2"], prep["w2"], prep["b2"],
      prep["S3"], prep["w3"], prep["b3"])


# ----------------------------------------------------------------------------
# Kernel 2: fused line1 (+ReLU) and line2; hidden (M, 1024) stays in VMEM.
# ----------------------------------------------------------------------------
def _mlp_kernel(x_ref, w1_ref, b1_ref, w2_ref, b2_ref, o_ref):
    h = jnp.dot(x_ref[...], w1_ref[...], preferred_element_type=jnp.float32)
    h = jnp.maximum(h + b1_ref[...], 0.0)            # lane-dense (tm, 1024), VMEM-resident
    y = jnp.dot(h, w2_ref[...], preferred_element_type=jnp.float32) + b2_ref[...]
    o_ref[...] = y.astype(o_ref.dtype)


def mlp(x, w1, b1, w2, b2):
    M, K = x.shape
    N1 = w1.shape[1]
    N2 = w2.shape[1]
    tm = min(512, _round_up(M, 8))                   # M-tiling for large M / v7x megacore
    Mp = _round_up(M, tm)
    if Mp != M:
        x = jnp.pad(x, ((0, Mp - M), (0, 0)))
    out = pl.pallas_call(
        _mlp_kernel,
        out_shape=jax.ShapeDtypeStruct((Mp, N2), jnp.float32),
        grid=(Mp // tm,),
        in_specs=[
            pl.BlockSpec((tm, K), lambda i: (i, 0)),
            pl.BlockSpec((K, N1), lambda i: (0, 0)),
            pl.BlockSpec((1, N1), lambda i: (0, 0)),
            pl.BlockSpec((N1, N2), lambda i: (0, 0)),
            pl.BlockSpec((1, N2), lambda i: (0, 0)),
        ],
        out_specs=pl.BlockSpec((tm, N2), lambda i: (i, 0)),
        compiler_params=pltpu.CompilerParams(dimension_semantics=("parallel",)),
    )(x, w1, b1, w2, b2)
    return out[:M] if Mp != M else out


# ----------------------------------------------------------------------------
# One-time parameter preparation (BN folding + gather matrices). Host/numpy only.
# ----------------------------------------------------------------------------
def _conv_selectors(hi, wi, k=3, stride=2, pad=1):
    """0/1 matrices S[t] (Ho*Wo, Hi*Wi): S[t] @ A selects (with zero padding) the
    input row feeding tap t=(kh,kw) of every output position, channels untouched."""
    ho = (hi + 2 * pad - k) // stride + 1
    wo = (wi + 2 * pad - k) // stride + 1
    s = np.zeros((k * k, ho * wo, hi * wi), np.float32)
    for kh in range(k):
        for kw in range(k):
            t = kh * k + kw
            for oh in range(ho):
                ih = oh * stride - pad + kh
                if ih < 0 or ih >= hi:
                    continue
                for ow in range(wo):
                    iw = ow * stride - pad + kw
                    if iw < 0 or iw >= wi:
                        continue
                    s[t, oh * wo + ow, ih * wi + iw] = 1.0
    return s, ho, wo


def _fold_bn(p, eps=1e-5):
    """Fold eval-mode BatchNorm into per-tap conv weights.
    Returns w_taps (9, Cin, Cout) and b_fold (1, Cout)."""
    w, b = p["w"], p["b"]                            # w: (Cout, Cin, 3, 3)
    cout, cin = w.shape[0], w.shape[1]
    scale = p["gamma"] / jnp.sqrt(p["var"] + eps)
    w_taps = jnp.transpose(w, (2, 3, 1, 0)).reshape(9, cin, cout) * scale
    b_fold = ((b - p["mean"]) * scale + p["beta"]).reshape(1, cout)
    return w_taps.astype(jnp.float32), b_fold.astype(jnp.float32)


def prepare_params(params, input_hw, eps=1e-5):
    """Call once per (H, W): folds BN and builds the stride-2 gather matrices."""
    H, W = input_hw
    c1w, c1b = _fold_bn(params["conv1"], eps)        # (9, 1, 16)
    c2w, c2b = _fold_bn(params["conv2"], eps)        # (9, 16, 32)
    c3w, c3b = _fold_bn(params["conv3"], eps)        # (9, 32, 64)
    _, h1, w1 = _conv_selectors(H, W)                # conv1 geometry only
    s2, h2, w2 = _conv_selectors(h1, w1)
    s3, h3, w3 = _conv_selectors(h2, w2)
    return {
        "w1": c1w.reshape(9, c1w.shape[2]), "b1": c1b,
        "S2": jnp.asarray(s2), "w2": c2w, "b2": c2b,
        "S3": jnp.asarray(s3), "w3": c3w, "b3": c3b,
        "l1w": params["line1"]["w"].astype(jnp.float32),
        "l1b": params["line1"]["b"].reshape(1, -1).astype(jnp.float32),
        "l2w": params["line2"]["w"].astype(jnp.float32),
        "l2b": params["line2"]["b"].reshape(1, -1).astype(jnp.float32),
    }


# ----------------------------------------------------------------------------
# Forward pass.
# ----------------------------------------------------------------------------
def _im2col_input(x, k=3, stride=2, pad=1):
    """x: (B, H, W) single-channel -> (B, Ho*Wo, 9), column order (kh, kw).
    XLA-side; fuses into one op under jit (this is the raw HBM input anyway)."""
    B, H, W = x.shape
    xp = jnp.pad(x, ((0, 0), (pad, pad), (pad, pad)))
    Ho = (H + 2 * pad - k) // stride + 1
    Wo = (W + 2 * pad - k) // stride + 1
    cols = []
    for kh in range(k):
        for kw in range(k):
            cols.append(xp[:, kh:kh + stride * (Ho - 1) + 1:stride,
                              kw:kw + stride * (Wo - 1) + 1:stride])
    col = jnp.stack(cols, axis=-1)                   # (B, Ho, Wo, 9)
    return col.reshape(B, Ho * Wo, k * k)


@jax.jit
def cnn_forward(prep, x):
    """x: (B, H, W) float32 -> (B, T, output_dim) with T = 64*H3*W3 // 40."""
    B = x.shape[0]
    col1 = _im2col_input(x.astype(jnp.float32))                    # (B, S1, 9)
    a3 = conv_stack(col1, prep)                                    # (B, S3, 64) channels-last
    # PyTorch .view(B,-1,40) flattens NCHW (c, h, w)-major -> one tiny transpose.
    feats = jnp.transpose(a3, (0, 2, 1)).reshape(B, -1)            # (B, 64*S3)
    xt = feats.reshape(-1, 40)                                     # (B*T, 40)
    y = mlp(xt, prep["l1w"], prep["l1b"], prep["l2w"], prep["l2b"])
    return y.reshape(B, -1, y.shape[-1])


# ----------------------------------------------------------------------------
# Parameter init (matches the PyTorch module's shapes) and pure-JAX reference.
# ----------------------------------------------------------------------------
def init_params(key, output_dim):
    def conv_block(k, cin, cout):
        k1, k2, k3, k4, k5, k6 = jax.random.split(k, 6)
        return {
            "w": 0.1 * jax.random.normal(k1, (cout, cin, 3, 3), jnp.float32),
            "b": 0.1 * jax.random.normal(k2, (cout,), jnp.float32),
            "gamma": 1.0 + 0.1 * jax.random.normal(k3, (cout,), jnp.float32),
            "beta": 0.1 * jax.random.normal(k4, (cout,), jnp.float32),
            "mean": 0.1 * jax.random.normal(k5, (cout,), jnp.float32),
            "var": jax.random.uniform(k6, (cout,), jnp.float32, 0.5, 1.5),
        }

    def linear(k, fin, fout):
        k1, k2 = jax.random.split(k)
        s = 1.0 / (fin ** 0.5)
        return {
            "w": jax.random.uniform(k1, (fin, fout), jnp.float32, -s, s),
            "b": jax.random.uniform(k2, (fout,), jnp.float32, -s, s),
        }

    ks = jax.random.split(key, 5)
    return {
        "conv1": conv_block(ks[0], 1, 16),
        "conv2": conv_block(ks[1], 16, 32),
        "conv3": conv_block(ks[2], 32, 64),
        "line1": linear(ks[3], 40, 1024),
        "line2": linear(ks[4], 1024, output_dim),
    }


def _reference_forward(params, x, eps=1e-5):
    hp = jax.lax.Precision.HIGHEST

    def conv_bn_relu(h, p):
        out = jax.lax.conv_general_dilated(
            h, p["w"], window_strides=(2, 2), padding=((1, 1), (1, 1)),
            dimension_numbers=("NCHW", "OIHW", "NCHW"), precision=hp)
        out = out + p["b"][None, :, None, None]
        scale = p["gamma"] / jnp.sqrt(p["var"] + eps)
        out = (scale[None, :, None, None] * (out - p["mean"][None, :, None, None])
               + p["beta"][None, :, None, None])
        return jnp.maximum(out, 0.0)

    h = x[:, None, :, :]
    h = conv_bn_relu(h, params["conv1"])
    h = conv_bn_relu(h, params["conv2"])
    h = conv_bn_relu(h, params["conv3"])
    B = h.shape[0]
    h = h.reshape(B, -1, 40)
    h = jnp.maximum(jnp.dot(h, params["line1"]["w"], precision=hp)
                    + params["line1"]["b"], 0.0)
    return jnp.dot(h, params["line2"]["w"], precision=hp) + params["line2"]["b"]


if __name__ == "__main__":
    key = jax.random.PRNGKey(0)
    pkey, xkey = jax.random.split(key)
    output_dim = 32
    params = init_params(pkey, output_dim)
    H, W = 40, 8   # three stride-2 convs -> (B, 64, 5, 1) = 320 feats -> T = 8
    prep = prepare_params(params, (H, W))

    x = jax.random.normal(xkey, (2, H, W), jnp.float32)
    y = cnn_forward(prep, x)
    y = jax.block_until_ready(y)
    assert y.shape == (2, 8, output_dim), y.shape

    y_ref = _reference_forward(params, x)
    rel_err = float(jnp.max(jnp.abs(y - y_ref)) / (jnp.max(jnp.abs(y_ref)) + 1e-6))
    assert rel_err < 2e-2, rel_err
    print("KERNEL_OK")
</pallas_src>

<mosaic_0001>
module attributes {stable_mosaic.version = 11 : i64} {
  func.func @_conv_stack_kernel(%arg0: i32, %arg1: memref<1x80x9xf32, #tpu.memory_space<vmem>>, %arg2: memref<9x16xf32, #tpu.memory_space<vmem>>, %arg3: memref<1x16xf32, #tpu.memory_space<vmem>>, %arg4: memref<9x20x80xf32, #tpu.memory_space<vmem>>, %arg5: memref<9x16x32xf32, #tpu.memory_space<vmem>>, %arg6: memref<1x32xf32, #tpu.memory_space<vmem>>, %arg7: memref<9x5x20xf32, #tpu.memory_space<vmem>>, %arg8: memref<9x32x64xf32, #tpu.memory_space<vmem>>, %arg9: memref<1x64xf32, #tpu.memory_space<vmem>>, %arg10: memref<1x5x64xf32, #tpu.memory_space<vmem>>) attributes {dimension_semantics = [#tpu.dimension_semantics<parallel>], iteration_bounds = array<i64: 2>, scalar_prefetch = 0 : i64, scratch_operands = 0 : i64, tpu.core_type = #tpu.core_type<tc>, window_params = [{transform_indices = @transform_0, window_bounds = array<i64: 1, 80, 9>}, {pipeline_mode = #tpu.pipeline_mode<synchronous>, transform_indices = @transform_1, window_bounds = array<i64: 9, 16>}, {pipeline_mode = #tpu.pipeline_mode<synchronous>, transform_indices = @transform_2, window_bounds = array<i64: 1, 16>}, {pipeline_mode = #tpu.pipeline_mode<synchronous>, transform_indices = @transform_3, window_bounds = array<i64: 9, 20, 80>}, {pipeline_mode = #tpu.pipeline_mode<synchronous>, transform_indices = @transform_4, window_bounds = array<i64: 9, 16, 32>}, {pipeline_mode = #tpu.pipeline_mode<synchronous>, transform_indices = @transform_5, window_bounds = array<i64: 1, 32>}, {pipeline_mode = #tpu.pipeline_mode<synchronous>, transform_indices = @transform_6, window_bounds = array<i64: 9, 5, 20>}, {pipeline_mode = #tpu.pipeline_mode<synchronous>, transform_indices = @transform_7, window_bounds = array<i64: 9, 32, 64>}, {pipeline_mode = #tpu.pipeline_mode<synchronous>, transform_indices = @transform_8, window_bounds = array<i64: 1, 64>}, {transform_indices = @transform_9, window_bounds = array<i64: 1, 5, 64>}]} {
    %c0 = arith.constant 0 : index
    %c0_0 = arith.constant 0 : index
    %c0_1 = arith.constant 0 : index
    %0 = vector.load %arg1[%c0, %c0_0, %c0_1] : memref<1x80x9xf32, #tpu.memory_space<vmem>>, vector<1x80x9xf32>
    %1 = vector.shape_cast %0 : vector<1x80x9xf32> to vector<80x9xf32>
    %c0_2 = arith.constant 0 : index
    %c0_3 = arith.constant 0 : index
    %2 = vector.load %arg2[%c0_2, %c0_3] : memref<9x16xf32, #tpu.memory_space<vmem>>, vector<9x16xf32>
    %cst = arith.constant dense<0.000000e+00> : vector<80x16xf32>
    %3 = tpu.matmul %1, %2, %cst {dimension_numbers = #tpu.dot_dimension_numbers<[1], [0], [0], [1], [0, 0, 1, 1], [], []>} : vector<80x9xf32>, vector<9x16xf32>, vector<80x16xf32> -> vector<80x16xf32>
    %c0_4 = arith.constant 0 : index
    %c0_5 = arith.constant 0 : index
    %4 = vector.load %arg3[%c0_4, %c0_5] : memref<1x16xf32, #tpu.memory_space<vmem>>, vector<1x16xf32>
    %5 = vector.broadcast %4 : vector<1x16xf32> to vector<80x16xf32>
    %6 = arith.addf %3, %5 : vector<80x16xf32>
    %cst_6 = arith.constant 0.000000e+00 : f32
    %7 = vector.broadcast %cst_6 : f32 to vector<80x16xf32>
    %8 = arith.maximumf %6, %7 : vector<80x16xf32>
    %cst_7 = arith.constant 0.000000e+00 : f32
    %9 = vector.broadcast %cst_7 : f32 to vector<20x32xf32>
    %c0_8 = arith.constant 0 : index
    %c0_9 = arith.constant 0 : index
    %c0_10 = arith.constant 0 : index
    %10 = vector.load %arg4[%c0_8, %c0_9, %c0_10] : memref<9x20x80xf32, #tpu.memory_space<vmem>>, vector<1x20x80xf32>
    %11 = vector.shape_cast %10 : vector<1x20x80xf32> to vector<20x80xf32>
    %cst_11 = arith.constant dense<0.000000e+00> : vector<20x16xf32>
    %12 = tpu.matmul %11, %8, %cst_11 {dimension_numbers = #tpu.dot_dimension_numbers<[1], [0], [0], [1], [0, 0, 1, 1], [], []>} : vector<20x80xf32>, vector<80x16xf32>, vector<20x16xf32> -> vector<20x16xf32>
    %c0_12 = arith.constant 0 : index
    %c0_13 = arith.constant 0 : index
    %c0_14 = arith.constant 0 : index
    %13 = vector.load %arg5[%c0_12, %c0_13, %c0_14] : memref<9x16x32xf32, #tpu.memory_space<vmem>>, vector<1x16x32xf32>
    %14 = vector.shape_cast %13 : vector<1x16x32xf32> to vector<16x32xf32>
    %cst_15 = arith.constant dense<0.000000e+00> : vector<20x32xf32>
    %15 = tpu.matmul %12, %14, %cst_15 {dimension_numbers = #tpu.dot_dimension_numbers<[1], [0], [0], [1], [0, 0, 1, 1], [], []>} : vector<20x16xf32>, vector<16x32xf32>, vector<20x32xf32> -> vector<20x32xf32>
    %16 = arith.addf %9, %15 : vector<20x32xf32>
    %c1 = arith.constant 1 : index
    %c0_16 = arith.constant 0 : index
    %c0_17 = arith.constant 0 : index
    %17 = vector.load %arg4[%c1, %c0_16, %c0_17] : memref<9x20x80xf32, #tpu.memory_space<vmem>>, vector<1x20x80xf32>
    %18 = vector.shape_cast %17 : vector<1x20x80xf32> to vector<20x80xf32>
    %cst_18 = arith.constant dense<0.000000e+00> : vector<20x16xf32>
    %19 = tpu.matmul %18, %8, %cst_18 {dimension_numbers = #tpu.dot_dimension_numbers<[1], [0], [0], [1], [0, 0, 1, 1], [], []>} : vector<20x80xf32>, vector<80x16xf32>, vector<20x16xf32> -> vector<20x16xf32>
    %c1_19 = arith.constant 1 : index
    %c0_20 = arith.constant 0 : index
    %c0_21 = arith.constant 0 : index
    %20 = vector.load %arg5[%c1_19, %c0_20, %c0_21] : memref<9x16x32xf32, #tpu.memory_space<vmem>>, vector<1x16x32xf32>
    %21 = vector.shape_cast %20 : vector<1x16x32xf32> to vector<16x32xf32>
    %cst_22 = arith.constant dense<0.000000e+00> : vector<20x32xf32>
    %22 = tpu.matmul %19, %21, %cst_22 {dimension_numbers = #tpu.dot_dimension_numbers<[1], [0], [0], [1], [0, 0, 1, 1], [], []>} : vector<20x16xf32>, vector<16x32xf32>, vector<20x32xf32> -> vector<20x32xf32>
    %23 = arith.addf %16, %22 : vector<20x32xf32>
    %c2 = arith.constant 2 : index
    %c0_23 = arith.constant 0 : index
    %c0_24 = arith.constant 0 : index
    %24 = vector.load %arg4[%c2, %c0_23, %c0_24] : memref<9x20x80xf32, #tpu.memory_space<vmem>>, vector<1x20x80xf32>
    %25 = vector.shape_cast %24 : vector<1x20x80xf32> to vector<20x80xf32>
    %cst_25 = arith.constant dense<0.000000e+00> : vector<20x16xf32>
    %26 = tpu.matmul %25, %8, %cst_25 {dimension_numbers = #tpu.dot_dimension_numbers<[1], [0], [0], [1], [0, 0, 1, 1], [], []>} : vector<20x80xf32>, vector<80x16xf32>, vector<20x16xf32> -> vector<20x16xf32>
    %c2_26 = arith.constant 2 : index
    %c0_27 = arith.constant 0 : index
    %c0_28 = arith.constant 0 : index
    %27 = vector.load %arg5[%c2_26, %c0_27, %c0_28] : memref<9x16x32xf32, #tpu.memory_space<vmem>>, vector<1x16x32xf32>
    %28 = vector.shape_cast %27 : vector<1x16x32xf32> to vector<16x32xf32>
    %cst_29 = arith.constant dense<0.000000e+00> : vector<20x32xf32>
    %29 = tpu.matmul %26, %28, %cst_29 {dimension_numbers = #tpu.dot_dimension_numbers<[1], [0], [0], [1], [0, 0, 1, 1], [], []>} : vector<20x16xf32>, vector<16x32xf32>, vector<20x32xf32> -> vector<20x32xf32>
    %30 = arith.addf %23, %29 : vector<20x32xf32>
    %c3 = arith.constant 3 : index
    %c0_30 = arith.constant 0 : index
    %c0_31 = arith.constant 0 : index
    %31 = vector.load %arg4[%c3, %c0_30, %c0_31] : memref<9x20x80xf32, #tpu.memory_space<vmem>>, vector<1x20x80xf32>
    %32 = vector.shape_cast %31 : vector<1x20x80xf32> to vector<20x80xf32>
    %cst_32 = arith.constant dense<0.000000e+00> : vector<20x16xf32>
    %33 = tpu.matmul %32, %8, %cst_32 {dimension_numbers = #tpu.dot_dimension_numbers<[1], [0], [0], [1], [0, 0, 1, 1], [], []>} : vector<20x80xf32>, vector<80x16xf32>, vector<20x16xf32> -> vector<20x16xf32>
    %c3_33 = arith.constant 3 : index
    %c0_34 = arith.constant 0 : index
    %c0_35 = arith.constant 0 : index
    %34 = vector.load %arg5[%c3_33, %c0_34, %c0_35] : memref<9x16x32xf32, #tpu.memory_space<vmem>>, vector<1x16x32xf32>
    %35 = vector.shape_cast %34 : vector<1x16x32xf32> to vector<16x32xf32>
    %cst_36 = arith.constant dense<0.000000e+00> : vector<20x32xf32>
    %36 = tpu.matmul %33, %35, %cst_36 {dimension_numbers = #tpu.dot_dimension_numbers<[1], [0], [0], [1], [0, 0, 1, 1], [], []>} : vector<20x16xf32>, vector<16x32xf32>, vector<20x32xf32> -> vector<20x32xf32>
    %37 = arith.addf %30, %36 : vector<20x32xf32>
    %c4 = arith.constant 4 : index
    %c0_37 = arith.constant 0 : index
    %c0_38 = arith.constant 0 : index
    %38 = vector.load %arg4[%c4, %c0_37, %c0_38] : memref<9x20x80xf32, #tpu.memory_space<vmem>>, vector<1x20x80xf32>
    %39 = vector.shape_cast %38 : vector<1x20x80xf32> to vector<20x80xf32>
    %cst_39 = arith.constant dense<0.000000e+00> : vector<20x16xf32>
    %40 = tpu.matmul %39, %8, %cst_39 {dimension_numbers = #tpu.dot_dimension_numbers<[1], [0], [0], [1], [0, 0, 1, 1], [], []>} : vector<20x80xf32>, vector<80x16xf32>, vector<20x16xf32> -> vector<20x16xf32>
    %c4_40 = arith.constant 4 : index
    %c0_41 = arith.constant 0 : index
    %c0_42 = arith.constant 0 : index
    %41 = vector.load %arg5[%c4_40, %c0_41, %c0_42] : memref<9x16x32xf32, #tpu.memory_space<vmem>>, vector<1x16x32xf32>
    %42 = vector.shape_cast %41 : vector<1x16x32xf32> to vector<16x32xf32>
    %cst_43 = arith.constant dense<0.000000e+00> : vector<20x32xf32>
    %43 = tpu.matmul %40, %42, %cst_43 {dimension_numbers = #tpu.dot_dimension_numbers<[1], [0], [0], [1], [0, 0, 1, 1], [], []>} : vector<20x16xf32>, vector<16x32xf32>, vector<20x32xf32> -> vector<20x32xf32>
    %44 = arith.addf %37, %43 : vector<20x32xf32>
    %c5 = arith.constant 5 : index
    %c0_44 = arith.constant 0 : index
    %c0_45 = arith.constant 0 : index
    %45 = vector.load %arg4[%c5, %c0_44, %c0_45] : memref<9x20x80xf32, #tpu.memory_space<vmem>>, vector<1x20x80xf32>
    %46 = vector.shape_cast %45 : vector<1x20x80xf32> to vector<20x80xf32>
    %cst_46 = arith.constant dense<0.000000e+00> : vector<20x16xf32>
    %47 = tpu.matmul %46, %8, %cst_46 {dimension_numbers = #tpu.dot_dimension_numbers<[1], [0], [0], [1], [0, 0, 1, 1], [], []>} : vector<20x80xf32>, vector<80x16xf32>, vector<20x16xf32> -> vector<20x16xf32>
    %c5_47 = arith.constant 5 : index
    %c0_48 = arith.constant 0 : index
    %c0_49 = arith.constant 0 : index
    %48 = vector.load %arg5[%c5_47, %c0_48, %c0_49] : memref<9x16x32xf32, #tpu.memory_space<vmem>>, vector<1x16x32xf32>
    %49 = vector.shape_cast %48 : vector<1x16x32xf32> to vector<16x32xf32>
    %cst_50 = arith.constant dense<0.000000e+00> : vector<20x32xf32>
    %50 = tpu.matmul %47, %49, %cst_50 {dimension_numbers = #tpu.dot_dimension_numbers<[1], [0], [0], [1], [0, 0, 1, 1], [], []>} : vector<20x16xf32>, vector<16x32xf32>, vector<20x32xf32> -> vector<20x32xf32>
    %51 = arith.addf %44, %50 : vector<20x32xf32>
    %c6 = arith.constant 6 : index
    %c0_51 = arith.constant 0 : index
    %c0_52 = arith.constant 0 : index
    %52 = vector.load %arg4[%c6, %c0_51, %c0_52] : memref<9x20x80xf32, #tpu.memory_space<vmem>>, vector<1x20x80xf32>
    %53 = vector.shape_cast %52 : vector<1x20x80xf32> to vector<20x80xf32>
    %cst_53 = arith.constant dense<0.000000e+00> : vector<20x16xf32>
    %54 = tpu.matmul %53, %8, %cst_53 {dimension_numbers = #tpu.dot_dimension_numbers<[1], [0], [0], [1], [0, 0, 1, 1], [], []>} : vector<20x80xf32>, vector<80x16xf32>, vector<20x16xf32> -> vector<20x16xf32>
    %c6_54 = arith.constant 6 : index
    %c0_55 = arith.constant 0 : index
    %c0_56 = arith.constant 0 : index
    %55 = vector.load %arg5[%c6_54, %c0_55, %c0_56] : memref<9x16x32xf32, #tpu.memory_space<vmem>>, vector<1x16x32xf32>
    %56 = vector.shape_cast %55 : vector<1x16x32xf32> to vector<16x32xf32>
    %cst_57 = arith.constant dense<0.000000e+00> : vector<20x32xf32>
    %57 = tpu.matmul %54, %56, %cst_57 {dimension_numbers = #tpu.dot_dimension_numbers<[1], [0], [0], [1], [0, 0, 1, 1], [], []>} : vector<20x16xf32>, vector<16x32xf32>, vector<20x32xf32> -> vector<20x32xf32>
    %58 = arith.addf %51, %57 : vector<20x32xf32>
    %c7 = arith.constant 7 : index
    %c0_58 = arith.constant 0 : index
    %c0_59 = arith.constant 0 : index
    %59 = vector.load %arg4[%c7, %c0_58, %c0_59] : memref<9x20x80xf32, #tpu.memory_space<vmem>>, vector<1x20x80xf32>
    %60 = vector.shape_cast %59 : vector<1x20x80xf32> to vector<20x80xf32>
    %cst_60 = arith.constant dense<0.000000e+00> : vector<20x16xf32>
    %61 = tpu.matmul %60, %8, %cst_60 {dimension_numbers = #tpu.dot_dimension_numbers<[1], [0], [0], [1], [0, 0, 1, 1], [], []>} : vector<20x80xf32>, vector<80x16xf32>, vector<20x16xf32> -> vector<20x16xf32>
    %c7_61 = arith.constant 7 : index
    %c0_62 = arith.constant 0 : index
    %c0_63 = arith.constant 0 : index
    %62 = vector.load %arg5[%c7_61, %c0_62, %c0_63] : memref<9x16x32xf32, #tpu.memory_space<vmem>>, vector<1x16x32xf32>
    %63 = vector.shape_cast %62 : vector<1x16x32xf32> to vector<16x32xf32>
    %cst_64 = arith.constant dense<0.000000e+00> : vector<20x32xf32>
    %64 = tpu.matmul %61, %63, %cst_64 {dimension_numbers = #tpu.dot_dimension_numbers<[1], [0], [0], [1], [0, 0, 1, 1], [], []>} : vector<20x16xf32>, vector<16x32xf32>, vector<20x32xf32> -> vector<20x32xf32>
    %65 = arith.addf %58, %64 : vector<20x32xf32>
    %c8 = arith.constant 8 : index
    %c0_65 = arith.constant 0 : index
    %c0_66 = arith.constant 0 : index
    %66 = vector.load %arg4[%c8, %c0_65, %c0_66] : memref<9x20x80xf32, #tpu.memory_space<vmem>>, vector<1x20x80xf32>
    %67 = vector.shape_cast %66 : vector<1x20x80xf32> to vector<20x80xf32>
    %cst_67 = arith.constant dense<0.000000e+00> : vector<20x16xf32>
    %68 = tpu.matmul %67, %8, %cst_67 {dimension_numbers = #tpu.dot_dimension_numbers<[1], [0], [0], [1], [0, 0, 1, 1], [], []>} : vector<20x80xf32>, vector<80x16xf32>, vector<20x16xf32> -> vector<20x16xf32>
    %c8_68 = arith.constant 8 : index
    %c0_69 = arith.constant 0 : index
    %c0_70 = arith.constant 0 : index
    %69 = vector.load %arg5[%c8_68, %c0_69, %c0_70] : memref<9x16x32xf32, #tpu.memory_space<vmem>>, vector<1x16x32xf32>
    %70 = vector.shape_cast %69 : vector<1x16x32xf32> to vector<16x32xf32>
    %cst_71 = arith.constant dense<0.000000e+00> : vector<20x32xf32>
    %71 = tpu.matmul %68, %70, %cst_71 {dimension_numbers = #tpu.dot_dimension_numbers<[1], [0], [0], [1], [0, 0, 1, 1], [], []>} : vector<20x16xf32>, vector<16x32xf32>, vector<20x32xf32> -> vector<20x32xf32>
    %72 = arith.addf %65, %71 : vector<20x32xf32>
    %c0_72 = arith.constant 0 : index
    %c0_73 = arith.constant 0 : index
    %73 = vector.load %arg6[%c0_72, %c0_73] : memref<1x32xf32, #tpu.memory_space<vmem>>, vector<1x32xf32>
    %74 = vector.broadcast %73 : vector<1x32xf32> to vector<20x32xf32>
    %75 = arith.addf %72, %74 : vector<20x32xf32>
    %cst_74 = arith.constant 0.000000e+00 : f32
    %76 = vector.broadcast %cst_74 : f32 to vector<20x32xf32>
    %77 = arith.maximumf %75, %76 : vector<20x32xf32>
    %cst_75 = arith.constant 0.000000e+00 : f32
    %78 = vector.broadcast %cst_75 : f32 to vector<5x64xf32>
    %c0_76 = arith.constant 0 : index
    %c0_77 = arith.constant 0 : index
    %c0_78 = arith.constant 0 : index
    %79 = vector.load %arg7[%c0_76, %c0_77, %c0_78] : memref<9x5x20xf32, #tpu.memory_space<vmem>>, vector<1x5x20xf32>
    %80 = vector.shape_cast %79 : vector<1x5x20xf32> to vector<5x20xf32>
    %cst_79 = arith.constant dense<0.000000e+00> : vector<5x32xf32>
    %81 = tpu.matmul %80, %77, %cst_79 {dimension_numbers = #tpu.dot_dimension_numbers<[1], [0], [0], [1], [0, 0, 1, 1], [], []>} : vector<5x20xf32>, vector<20x32xf32>, vector<5x32xf32> -> vector<5x32xf32>
    %c0_80 = arith.constant 0 : index
    %c0_81 = arith.constant 0 : index
    %c0_82 = arith.constant 0 : index
    %82 = vector.load %arg8[%c0_80, %c0_81, %c0_82] : memref<9x32x64xf32, #tpu.memory_space<vmem>>, vector<1x32x64xf32>
    %83 = vector.shape_cast %82 : vector<1x32x64xf32> to vector<32x64xf32>
    %cst_83 = arith.constant dense<0.000000e+00> : vector<5x64xf32>
    %84 = tpu.matmul %81, %83, %cst_83 {dimension_numbers = #tpu.dot_dimension_numbers<[1], [0], [0], [1], [0, 0, 1, 1], [], []>} : vector<5x32xf32>, vector<32x64xf32>, vector<5x64xf32> -> vector<5x64xf32>
    %85 = arith.addf %78, %84 : vector<5x64xf32>
    %c1_84 = arith.constant 1 : index
    %c0_85 = arith.constant 0 : index
    %c0_86 = arith.constant 0 : index
    %86 = vector.load %arg7[%c1_84, %c0_85, %c0_86] : memref<9x5x20xf32, #tpu.memory_space<vmem>>, vector<1x5x20xf32>
    %87 = vector.shape_cast %86 : vector<1x5x20xf32> to vector<5x20xf32>
    %cst_87 = arith.constant dense<0.000000e+00> : vector<5x32xf32>
    %88 = tpu.matmul %87, %77, %cst_87 {dimension_numbers = #tpu.dot_dimension_numbers<[1], [0], [0], [1], [0, 0, 1, 1], [], []>} : vector<5x20xf32>, vector<20x32xf32>, vector<5x32xf32> -> vector<5x32xf32>
    %c1_88 = arith.constant 1 : index
    %c0_89 = arith.constant 0 : index
    %c0_90 = arith.constant 0 : index
    %89 = vector.load %arg8[%c1_88, %c0_89, %c0_90] : memref<9x32x64xf32, #tpu.memory_space<vmem>>, vector<1x32x64xf32>
    %90 = vector.shape_cast %89 : vector<1x32x64xf32> to vector<32x64xf32>
    %cst_91 = arith.constant dense<0.000000e+00> : vector<5x64xf32>
    %91 = tpu.matmul %88, %90, %cst_91 {dimension_numbers = #tpu.dot_dimension_numbers<[1], [0], [0], [1], [0, 0, 1, 1], [], []>} : vector<5x32xf32>, vector<32x64xf32>, vector<5x64xf32> -> vector<5x64xf32>
    %92 = arith.addf %85, %91 : vector<5x64xf32>
    %c2_92 = arith.constant 2 : index
    %c0_93 = arith.constant 0 : index
    %c0_94 = arith.constant 0 : index
    %93 = vector.load %arg7[%c2_92, %c0_93, %c0_94] : memref<9x5x20xf32, #tpu.memory_space<vmem>>, vector<1x5x20xf32>
    %94 = vector.shape_cast %93 : vector<1x5x20xf32> to vector<5x20xf32>
    %cst_95 = arith.constant dense<0.000000e+00> : vector<5x32xf32>
    %95 = tpu.matmul %94, %77, %cst_95 {dimension_numbers = #tpu.dot_dimension_numbers<[1], [0], [0], [1], [0, 0, 1, 1], [], []>} : vector<5x20xf32>, vector<20x32xf32>, vector<5x32xf32> -> vector<5x32xf32>
    %c2_96 = arith.constant 2 : index
    %c0_97 = arith.constant 0 : index
    %c0_98 = arith.constant 0 : index
    %96 = vector.load %arg8[%c2_96, %c0_97, %c0_98] : memref<9x32x64xf32, #tpu.memory_space<vmem>>, vector<1x32x64xf32>
    %97 = vector.shape_cast %96 : vector<1x32x64xf32> to vector<32x64xf32>
    %cst_99 = arith.constant dense<0.000000e+00> : vector<5x64xf32>
    %98 = tpu.matmul %95, %97, %cst_99 {dimension_numbers = #tpu.dot_dimension_numbers<[1], [0], [0], [1], [0, 0, 1, 1], [], []>} : vector<5x32xf32>, vector<32x64xf32>, vector<5x64xf32> -> vector<5x64xf32>
    %99 = arith.addf %92, %98 : vector<5x64xf32>
    %c3_100 = arith.constant 3 : index
    %c0_101 = arith.constant 0 : index
    %c0_102 = arith.constant 0 : index
    %100 = vector.load %arg7[%c3_100, %c0_101, %c0_102] : memref<9x5x20xf32, #tpu.memory_space<vmem>>, vector<1x5x20xf32>
    %101 = vector.shape_cast %100 : vector<1x5x20xf32> to vector<5x20xf32>
    %cst_103 = arith.constant dense<0.000000e+00> : vector<5x32xf32>
    %102 = tpu.matmul %101, %77, %cst_103 {dimension_numbers = #tpu.dot_dimension_numbers<[1], [0], [0], [1], [0, 0, 1, 1], [], []>} : vector<5x20xf32>, vector<20x32xf32>, vector<5x32xf32> -> vector<5x32xf32>
    %c3_104 = arith.constant 3 : index
    %c0_105 = arith.constant 0 : index
    %c0_106 = arith.constant 0 : index
    %103 = vector.load %arg8[%c3_104, %c0_105, %c0_106] : memref<9x32x64xf32, #tpu.memory_space<vmem>>, vector<1x32x64xf32>
    %104 = vector.shape_cast %103 : vector<1x32x64xf32> to vector<32x64xf32>
    %cst_107 = arith.constant dense<0.000000e+00> : vector<5x64xf32>
    %105 = tpu.matmul %102, %104, %cst_107 {dimension_numbers = #tpu.dot_dimension_numbers<[1], [0], [0], [1], [0, 0, 1, 1], [], []>} : vector<5x32xf32>, vector<32x64xf32>, vector<5x64xf32> -> vector<5x64xf32>
    %106 = arith.addf %99, %105 : vector<5x64xf32>
    %c4_108 = arith.constant 4 : index
    %c0_109 = arith.constant 0 : index
    %c0_110 = arith.constant 0 : index
    %107 = vector.load %arg7[%c4_108, %c0_109, %c0_110] : memref<9x5x20xf32, #tpu.memory_space<vmem>>, vector<1x5x20xf32>
    %108 = vector.shape_cast %107 : vector<1x5x20xf32> to vector<5x20xf32>
    %cst_111 = arith.constant dense<0.000000e+00> : vector<5x32xf32>
    %109 = tpu.matmul %108, %77, %cst_111 {dimension_numbers = #tpu.dot_dimension_numbers<[1], [0], [0], [1], [0, 0, 1, 1], [], []>} : vector<5x20xf32>, vector<20x32xf32>, vector<5x32xf32> -> vector<5x32xf32>
    %c4_112 = arith.constant 4 : index
    %c0_113 = arith.constant 0 : index
    %c0_114 = arith.constant 0 : index
    %110 = vector.load %arg8[%c4_112, %c0_113, %c0_114] : memref<9x32x64xf32, #tpu.memory_space<vmem>>, vector<1x32x64xf32>
    %111 = vector.shape_cast %110 : vector<1x32x64xf32> to vector<32x64xf32>
    %cst_115 = arith.constant dense<0.000000e+00> : vector<5x64xf32>
    %112 = tpu.matmul %109, %111, %cst_115 {dimension_numbers = #tpu.dot_dimension_numbers<[1], [0], [0], [1], [0, 0, 1, 1], [], []>} : vector<5x32xf32>, vector<32x64xf32>, vector<5x64xf32> -> vector<5x64xf32>
    %113 = arith.addf %106, %112 : vector<5x64xf32>
    %c5_116 = arith.constant 5 : index
    %c0_117 = arith.constant 0 : index
    %c0_118 = arith.constant 0 : index
    %114 = vector.load %arg7[%c5_116, %c0_117, %c0_118] : memref<9x5x20xf32, #tpu.memory_space<vmem>>, vector<1x5x20xf32>
    %115 = vector.shape_cast %114 : vector<1x5x20xf32> to vector<5x20xf32>
    %cst_119 = arith.constant dense<0.000000e+00> : vector<5x32xf32>
    %116 = tpu.matmul %115, %77, %cst_119 {dimension_numbers = #tpu.dot_dimension_numbers<[1], [0], [0], [1], [0, 0, 1, 1], [], []>} : vector<5x20xf32>, vector<20x32xf32>, vector<5x32xf32> -> vector<5x32xf32>
    %c5_120 = arith.constant 5 : index
    %c0_121 = arith.constant 0 : index
    %c0_122 = arith.constant 0 : index
    %117 = vector.load %arg8[%c5_120, %c0_121, %c0_122] : memref<9x32x64xf32, #tpu.memory_space<vmem>>, vector<1x32x64xf32>
    %118 = vector.shape_cast %117 : vector<1x32x64xf32> to vector<32x64xf32>
    %cst_123 = arith.constant dense<0.000000e+00> : vector<5x64xf32>
    %119 = tpu.matmul %116, %118, %cst_123 {dimension_numbers = #tpu.dot_dimension_numbers<[1], [0], [0], [1], [0, 0, 1, 1], [], []>} : vector<5x32xf32>, vector<32x64xf32>, vector<5x64xf32> -> vector<5x64xf32>
    %120 = arith.addf %113, %119 : vector<5x64xf32>
    %c6_124 = arith.constant 6 : index
    %c0_125 = arith.constant 0 : index
    %c0_126 = arith.constant 0 : index
    %121 = vector.load %arg7[%c6_124, %c0_125, %c0_126] : memref<9x5x20xf32, #tpu.memory_space<vmem>>, vector<1x5x20xf32>
    %122 = vector.shape_cast %121 : vector<1x5x20xf32> to vector<5x20xf32>
    %cst_127 = arith.constant dense<0.000000e+00> : vector<5x32xf32>
    %123 = tpu.matmul %122, %77, %cst_127 {dimension_numbers = #tpu.dot_dimension_numbers<[1], [0], [0], [1], [0, 0, 1, 1], [], []>} : vector<5x20xf32>, vector<20x32xf32>, vector<5x32xf32> -> vector<5x32xf32>
    %c6_128 = arith.constant 6 : index
    %c0_129 = arith.constant 0 : index
    %c0_130 = arith.constant 0 : index
    %124 = vector.load %arg8[%c6_128, %c0_129, %c0_130] : memref<9x32x64xf32, #tpu.memory_space<vmem>>, vector<1x32x64xf32>
    %125 = vector.shape_cast %124 : vector<1x32x64xf32> to vector<32x64xf32>
    %cst_131 = arith.constant dense<0.000000e+00> : vector<5x64xf32>
    %126 = tpu.matmul %123, %125, %cst_131 {dimension_numbers = #tpu.dot_dimension_numbers<[1], [0], [0], [1], [0, 0, 1, 1], [], []>} : vector<5x32xf32>, vector<32x64xf32>, vector<5x64xf32> -> vector<5x64xf32>
    %127 = arith.addf %120, %126 : vector<5x64xf32>
    %c7_132 = arith.constant 7 : index
    %c0_133 = arith.constant 0 : index
    %c0_134 = arith.constant 0 : index
    %128 = vector.load %arg7[%c7_132, %c0_133, %c0_134] : memref<9x5x20xf32, #tpu.memory_space<vmem>>, vector<1x5x20xf32>
    %129 = vector.shape_cast %128 : vector<1x5x20xf32> to vector<5x20xf32>
    %cst_135 = arith.constant dense<0.000000e+00> : vector<5x32xf32>
    %130 = tpu.matmul %129, %77, %cst_135 {dimension_numbers = #tpu.dot_dimension_numbers<[1], [0], [0], [1], [0, 0, 1, 1], [], []>} : vector<5x20xf32>, vector<20x32xf32>, vector<5x32xf32> -> vector<5x32xf32>
    %c7_136 = arith.constant 7 : index
    %c0_137 = arith.constant 0 : index
    %c0_138 = arith.constant 0 : index
    %131 = vector.load %arg8[%c7_136, %c0_137, %c0_138] : memref<9x32x64xf32, #tpu.memory_space<vmem>>, vector<1x32x64xf32>
    %132 = vector.shape_cast %131 : vector<1x32x64xf32> to vector<32x64xf32>
    %cst_139 = arith.constant dense<0.000000e+00> : vector<5x64xf32>
    %133 = tpu.matmul %130, %132, %cst_139 {dimension_numbers = #tpu.dot_dimension_numbers<[1], [0], [0], [1], [0, 0, 1, 1], [], []>} : vector<5x32xf32>, vector<32x64xf32>, vector<5x64xf32> -> vector<5x64xf32>
    %134 = arith.addf %127, %133 : vector<5x64xf32>
    %c8_140 = arith.constant 8 : index
    %c0_141 = arith.constant 0 : index
    %c0_142 = arith.constant 0 : index
    %135 = vector.load %arg7[%c8_140, %c0_141, %c0_142] : memref<9x5x20xf32, #tpu.memory_space<vmem>>, vector<1x5x20xf32>
    %136 = vector.shape_cast %135 : vector<1x5x20xf32> to vector<5x20xf32>
    %cst_143 = arith.constant dense<0.000000e+00> : vector<5x32xf32>
    %137 = tpu.matmul %136, %77, %cst_143 {dimension_numbers = #tpu.dot_dimension_numbers<[1], [0], [0], [1], [0, 0, 1, 1], [], []>} : vector<5x20xf32>, vector<20x32xf32>, vector<5x32xf32> -> vector<5x32xf32>
    %c8_144 = arith.constant 8 : index
    %c0_145 = arith.constant 0 : index
    %c0_146 = arith.constant 0 : index
    %138 = vector.load %arg8[%c8_144, %c0_145, %c0_146] : memref<9x32x64xf32, #tpu.memory_space<vmem>>, vector<1x32x64xf32>
    %139 = vector.shape_cast %138 : vector<1x32x64xf32> to vector<32x64xf32>
    %cst_147 = arith.constant dense<0.000000e+00> : vector<5x64xf32>
    %140 = tpu.matmul %137, %139, %cst_147 {dimension_numbers = #tpu.dot_dimension_numbers<[1], [0], [0], [1], [0, 0, 1, 1], [], []>} : vector<5x32xf32>, vector<32x64xf32>, vector<5x64xf32> -> vector<5x64xf32>
    %141 = arith.addf %134, %140 : vector<5x64xf32>
    %c0_148 = arith.constant 0 : index
    %c0_149 = arith.constant 0 : index
    %142 = vector.load %arg9[%c0_148, %c0_149] : memref<1x64xf32, #tpu.memory_space<vmem>>, vector<1x64xf32>
    %143 = vector.broadcast %142 : vector<1x64xf32> to vector<5x64xf32>
    %144 = arith.addf %141, %143 : vector<5x64xf32>
    %cst_150 = arith.constant 0.000000e+00 : f32
    %145 = vector.broadcast %cst_150 : f32 to vector<5x64xf32>
    %146 = arith.maximumf %144, %145 : vector<5x64xf32>
    %c0_151 = arith.constant 0 : index
    %c0_152 = arith.constant 0 : index
    %c0_153 = arith.constant 0 : index
    %147 = vector.load %arg10[%c0_151, %c0_152, %c0_153] : memref<1x5x64xf32, #tpu.memory_space<vmem>>, vector<1x5x64xf32>
    %148 = vector.shape_cast %147 : vector<1x5x64xf32> to vector<5x64xf32>
    %149 = vector.shape_cast %146 : vector<5x64xf32> to vector<1x5x64xf32>
    tpu.vector_store %arg10[%c0_151, %c0_152, %c0_153], %149 {strides = array<i32>} : memref<1x5x64xf32, #tpu.memory_space<vmem>>, vector<1x5x64xf32>,
    return
  }
  func.func @transform_0(%arg0: i32) -> (i32, i32, i32) {
    %c0_i32 = arith.constant 0 : i32
    %c0_i32_0 = arith.constant 0 : i32
    %c0_i32_1 = arith.constant 0 : i32
    return %arg0, %c0_i32, %c0_i32_0 : i32, i32, i32
  }
  func.func @transform_1(%arg0: i32) -> (i32, i32) {
    %c0_i32 = arith.constant 0 : i32
    %c0_i32_0 = arith.constant 0 : i32
    %c0_i32_1 = arith.constant 0 : i32
    return %c0_i32, %c0_i32_0 : i32, i32
  }
  func.func @transform_2(%arg0: i32) -> (i32, i32) {
    %c0_i32 = arith.constant 0 : i32
    %c0_i32_0 = arith.constant 0 : i32
    %c0_i32_1 = arith.constant 0 : i32
    return %c0_i32, %c0_i32_0 : i32, i32
  }
  func.func @transform_3(%arg0: i32) -> (i32, i32, i32) {
    %c0_i32 = arith.constant 0 : i32
    %c0_i32_0 = arith.constant 0 : i32
    %c0_i32_1 = arith.constant 0 : i32
    %c0_i32_2 = arith.constant 0 : i32
    return %c0_i32, %c0_i32_0, %c0_i32_1 : i32, i32, i32
  }
  func.func @transform_4(%arg0: i32) -> (i32, i32, i32) {
    %c0_i32 = arith.constant 0 : i32
    %c0_i32_0 = arith.constant 0 : i32
    %c0_i32_1 = arith.constant 0 : i32
    %c0_i32_2 = arith.constant 0 : i32
    return %c0_i32, %c0_i32_0, %c0_i32_1 : i32, i32, i32
  }
  func.func @transform_5(%arg0: i32) -> (i32, i32) {
    %c0_i32 = arith.constant 0 : i32
    %c0_i32_0 = arith.constant 0 : i32
    %c0_i32_1 = arith.constant 0 : i32
    return %c0_i32, %c0_i32_0 : i32, i32
  }
  func.func @transform_6(%arg0: i32) -> (i32, i32, i32) {
    %c0_i32 = arith.constant 0 : i32
    %c0_i32_0 = arith.constant 0 : i32
    %c0_i32_1 = arith.constant 0 : i32
    %c0_i32_2 = arith.constant 0 : i32
    return %c0_i32, %c0_i32_0, %c0_i32_1 : i32, i32, i32
  }
  func.func @transform_7(%arg0: i32) -> (i32, i32, i32) {
    %c0_i32 = arith.constant 0 : i32
    %c0_i32_0 = arith.constant 0 : i32
    %c0_i32_1 = arith.constant 0 : i32
    %c0_i32_2 = arith.constant 0 : i32
    return %c0_i32, %c0_i32_0, %c0_i32_1 : i32, i32, i32
  }
  func.func @transform_8(%arg0: i32) -> (i32, i32) {
    %c0_i32 = arith.constant 0 : i32
    %c0_i32_0 = arith.constant 0 : i32
    %c0_i32_1 = arith.constant 0 : i32
    return %c0_i32, %c0_i32_0 : i32, i32
  }
  func.func @transform_9(%arg0: i32) -> (i32, i32, i32) {
    %c0_i32 = arith.constant 0 : i32
    %c0_i32_0 = arith.constant 0 : i32
    %c0_i32_1 = arith.constant 0 : i32
    return %arg0, %c0_i32, %c0_i32_0 : i32, i32, i32
  }
}

module attributes {stable_mosaic.version = 11 : i64} {
  func.func @_mlp_kernel(%arg0: i32, %arg1: memref<16x40xf32, #tpu.memory_space<vmem>>, %arg2: memref<40x1024xf32, #tpu.memory_space<vmem>>, %arg3: memref<1x1024xf32, #tpu.memory_space<vmem>>, %arg4: memref<1024x32xf32, #tpu.memory_space<vmem>>, %arg5: memref<1x32xf32, #tpu.memory_space<vmem>>, %arg6: memref<16x32xf32, #tpu.memory_space<vmem>>) attributes {dimension_semantics = [#tpu.dimension_semantics<parallel>], iteration_bounds = array<i64: 1>, scalar_prefetch = 0 : i64, scratch_operands = 0 : i64, tpu.core_type = #tpu.core_type<tc>, window_params = [{transform_indices = @transform_0, window_bounds = array<i64: 16, 40>}, {pipeline_mode = #tpu.pipeline_mode<synchronous>, transform_indices = @transform_1, window_bounds = array<i64: 40, 1024>}, {pipeline_mode = #tpu.pipeline_mode<synchronous>, transform_indices = @transform_2, window_bounds = array<i64: 1, 1024>}, {pipeline_mode = #tpu.pipeline_mode<synchronous>, transform_indices = @transform_3, window_bounds = array<i64: 1024, 32>}, {pipeline_mode = #tpu.pipeline_mode<synchronous>, transform_indices = @transform_4, window_bounds = array<i64: 1, 32>}, {transform_indices = @transform_5, window_bounds = array<i64: 16, 32>}]} {
    %c0 = arith.constant 0 : index
    %c0_0 = arith.constant 0 : index
    %0 = vector.load %arg1[%c0, %c0_0] : memref<16x40xf32, #tpu.memory_space<vmem>>, vector<16x40xf32>
    %c0_1 = arith.constant 0 : index
    %c0_2 = arith.constant 0 : index
    %1 = vector.load %arg2[%c0_1, %c0_2] : memref<40x1024xf32, #tpu.memory_space<vmem>>, vector<40x1024xf32>
    %cst = arith.constant dense<0.000000e+00> : vector<16x1024xf32>
    %2 = tpu.matmul %0, %1, %cst {dimension_numbers = #tpu.dot_dimension_numbers<[1], [0], [0], [1], [0, 0, 1, 1], [], []>} : vector<16x40xf32>, vector<40x1024xf32>, vector<16x1024xf32> -> vector<16x1024xf32>
    %c0_3 = arith.constant 0 : index
    %c0_4 = arith.constant 0 : index
    %3 = vector.load %arg3[%c0_3, %c0_4] : memref<1x1024xf32, #tpu.memory_space<vmem>>, vector<1x1024xf32>
    %4 = vector.broadcast %3 : vector<1x1024xf32> to vector<16x1024xf32>
    %5 = arith.addf %2, %4 : vector<16x1024xf32>
    %cst_5 = arith.constant 0.000000e+00 : f32
    %6 = vector.broadcast %cst_5 : f32 to vector<16x1024xf32>
    %7 = arith.maximumf %5, %6 : vector<16x1024xf32>
    %c0_6 = arith.constant 0 : index
    %c0_7 = arith.constant 0 : index
    %8 = vector.load %arg4[%c0_6, %c0_7] : memref<1024x32xf32, #tpu.memory_space<vmem>>, vector<1024x32xf32>
    %cst_8 = arith.constant dense<0.000000e+00> : vector<16x32xf32>
    %9 = tpu.matmul %7, %8, %cst_8 {dimension_numbers = #tpu.dot_dimension_numbers<[1], [0], [0], [1], [0, 0, 1, 1], [], []>} : vector<16x1024xf32>, vector<1024x32xf32>, vector<16x32xf32> -> vector<16x32xf32>
    %c0_9 = arith.constant 0 : index
    %c0_10 = arith.constant 0 : index
    %10 = vector.load %arg5[%c0_9, %c0_10] : memref<1x32xf32, #tpu.memory_space<vmem>>, vector<1x32xf32>
    %11 = vector.broadcast %10 : vector<1x32xf32> to vector<16x32xf32>
    %12 = arith.addf %9, %11 : vector<16x32xf32>
    %c0_11 = arith.constant 0 : index
    %c0_12 = arith.constant 0 : index
    %13 = vector.load %arg6[%c0_11, %c0_12] : memref<16x32xf32, #tpu.memory_space<vmem>>, vector<16x32xf32>
    tpu.vector_store %arg6[%c0_11, %c0_12], %12 {strides = array<i32>} : memref<16x32xf32, #tpu.memory_space<vmem>>, vector<16x32xf32>,
    return
  }
  func.func @transform_0(%arg0: i32) -> (i32, i32) {
    %c0_i32 = arith.constant 0 : i32
    %c0_i32_0 = arith.constant 0 : i32
    return %arg0, %c0_i32 : i32, i32
  }
  func.func @transform_1(%arg0: i32) -> (i32, i32) {
    %c0_i32 = arith.constant 0 : i32
    %c0_i32_0 = arith.constant 0 : i32
    %c0_i32_1 = arith.constant 0 : i32
    return %c0_i32, %c0_i32_0 : i32, i32
  }
  func.func @transform_2(%arg0: i32) -> (i32, i32) {
    %c0_i32 = arith.constant 0 : i32
    %c0_i32_0 = arith.constant 0 : i32
    %c0_i32_1 = arith.constant 0 : i32
    return %c0_i32, %c0_i32_0 : i32, i32
  }
  func.func @transform_3(%arg0: i32) -> (i32, i32) {
    %c0_i32 = arith.constant 0 : i32
    %c0_i32_0 = arith.constant 0 : i32
    %c0_i32_1 = arith.constant 0 : i32
    return %c0_i32, %c0_i32_0 : i32, i32
  }
  func.func @transform_4(%arg0: i32) -> (i32, i32) {
    %c0_i32 = arith.constant 0 : i32
    %c0_i32_0 = arith.constant 0 : i32
    %c0_i32_1 = arith.constant 0 : i32
    return %c0_i32, %c0_i32_0 : i32, i32
  }
  func.func @transform_5(%arg0: i32) -> (i32, i32) {
    %c0_i32 = arith.constant 0 : i32
    %c0_i32_0 = arith.constant 0 : i32
    return %arg0, %c0_i32 : i32, i32
  }
}

</mosaic_0001>

<llo_original>
// kernel: cnn_forward.2
$region0: #{cnn_forward.2}
  #allocation0 [shape = 'u32[]', space=smem, size = 0x4, offset = 0x4, fixed_abs, tag = 'smem constant byte address 0x4 - core index']
  #allocation1 [shape = 'u32[72,128]{1,0:T(1,128)}', space=vmem, size = 0x9000, scoped, tag = 'internal scratch']
  %s0 = inlined_call_operand.vmem [shape: f32[2,80,9], index: 0, kind: input, shape index: {}]
  %s1 = inlined_call_operand.vmem [shape: f32[9,16], index: 1, kind: input, shape index: {}]
  %s2 = inlined_call_operand.vmem [shape: f32[1,16], index: 2, kind: input, shape index: {}]
  %s3 = inlined_call_operand.vmem [shape: f32[9,20,80], index: 3, kind: input, shape index: {}]
  %s4 = inlined_call_operand.vmem [shape: f32[9,16,32], index: 4, kind: input, shape index: {}]
  %s5 = inlined_call_operand.vmem [shape: f32[1,32], index: 5, kind: input, shape index: {}]
  %s6 = inlined_call_operand.vmem [shape: f32[9,5,20], index: 6, kind: input, shape index: {}]
  %s7 = inlined_call_operand.vmem [shape: f32[9,32,64], index: 7, kind: input, shape index: {}]
  %s8 = inlined_call_operand.vmem [shape: f32[1,64], index: 8, kind: input, shape index: {}]
  %s9 = inlined_call_operand.vmem [shape: f32[2,5,64], index: 9, kind: output, shape index: {}]
  %s10 = sld [smem:[#allocation0]]
  $region69: #{cnn_forward.2} parent=0
    _
  %s12 = ssub.s32 1, %s10
  %s13 = scalar_select 0, %s12, %s10
  loop: start=0, step=1, limit=4
  $region2: #{cnn_forward.2} parent=0 // loop_pre_header
    _
  $region3: #{cnn_forward.2} parent=0 // loop_header
    %s15 = sphi 0, %s19
    %p16 = scmp.ge.s32.totalorder %s15, 4
    %s25 = sphi 0, %s27
    %s28 = sphi 0, %s25
    %s29 = sphi 0, %s28
    %s45 = sphi 0, %s29
    %s49 = sphi 0, %s49
    %s51 = sphi 0, %s49
    %s52 = sphi 0, %s51
    %s66 = sphi 0, %s52
    %s70 = sphi 0, %s70
    %s72 = sphi 0, %s70
    %s73 = sphi 0, %s72
    %s87 = sphi 0, %s73
    %s91 = sphi 0, %s91
    %s93 = sphi 0, %s91
    %s94 = sphi 0, %s93
    %s108 = sphi 0, %s94
    %s112 = sphi 0, %s112
    %s114 = sphi 0, %s112
    %s115 = sphi 0, %s114
    %s129 = sphi 0, %s115
    %s133 = sphi 0, %s133
    %s135 = sphi 0, %s133
    %s136 = sphi 0, %s135
    %s150 = sphi 0, %s136
    %s154 = sphi 0, %s154
    %s156 = sphi 0, %s154
    %s157 = sphi 0, %s156
    %s171 = sphi 0, %s157
    %s175 = sphi 0, %s175
    %s177 = sphi 0, %s175
    %s178 = sphi 0, %s177
    %s192 = sphi 0, %s178
    %s196 = sphi 0, %s196
    %s198 = sphi 0, %s196
    %s199 = sphi 0, %s198
    %s213 = sphi 0, %s199
    %s219 = sphi 0, %s221
    %s222 = sphi 0, %s219
    %s223 = sphi 0, %s222
    %s239 = sphi 0, %s223
  $region4: #{cnn_forward.2} parent=0 // loop_header_branch
    %18 = sbr.rel (%p16) target = $region8
  $region5: #{cnn_forward.2} parent=0 // loop_body
    %s20 = ssub.s32 %s15, 1
    %s21 = ssub.s32 %s15, 2
    %s22 = sadd.s32 %s15, 1
    %s23 = ssub.s32 %s15, %s22
    %p24 = scmp.eq.s32.totalorder %s23, 0
    %s26 = sadd.s32 %s25, 1
    %s27 = scalar_select %p24, %s25, %s26
    %p30 = pneg %p24
    %p31 = scmp.eq.s32.totalorder %s15, 1
    %p32 = por %p30, %p31
    %p33 = scmp.ne.s32.totalorder %s25, %s28
    %p34 = scmp.eq.s32.totalorder %s15, 0
    %p35 = por %p33, %p34
    %p36 = scmp.ne.s32.totalorder %s25, %s28
    %p37 = scmp.eq.s32.totalorder %s20, 1
    %p38 = por %p36, %p37
    %p39 = scmp.ne.s32.totalorder %s28, %s29
    %p40 = scmp.eq.s32.totalorder %s20, 0
    %p41 = por %p39, %p40
    %p42 = scmp.ne.s32.totalorder %s28, %s29
    %p43 = scmp.eq.s32.totalorder %s21, 1
    %p44 = por %p42, %p43
    %p46 = scmp.ne.s32.totalorder %s29, %s45
    %p47 = scmp.eq.s32.totalorder %s21, 0
    %p48 = por %p46, %p47
    %s50 = sadd.s32 %s49, 1
    %p53 = scmp.eq.s32.totalorder %s15, 1
    %p54 = scmp.ne.s32.totalorder %s49, %s51
    %p55 = scmp.eq.s32.totalorder %s15, 0
    %p56 = por %p54, %p55
    %p57 = scmp.ne.s32.totalorder %s49, %s51
    %p58 = scmp.eq.s32.totalorder %s20, 1
    %p59 = por %p57, %p58
    %p60 = scmp.ne.s32.totalorder %s51, %s52
    %p61 = scmp.eq.s32.totalorder %s20, 0
    %p62 = por %p60, %p61
    %p63 = scmp.ne.s32.totalorder %s51, %s52
    %p64 = scmp.eq.s32.totalorder %s21, 1
    %p65 = por %p63, %p64
    %p67 = scmp.ne.s32.totalorder %s52, %s66
    %p68 = scmp.eq.s32.totalorder %s21, 0
    %p69 = por %p67, %p68
    %s71 = sadd.s32 %s70, 1
    %p74 = scmp.eq.s32.totalorder %s15, 1
    %p75 = scmp.ne.s32.totalorder %s70, %s72
    %p76 = scmp.eq.s32.totalorder %s15, 0
    %p77 = por %p75, %p76
    %p78 = scmp.ne.s32.totalorder %s70, %s72
    %p79 = scmp.eq.s32.totalorder %s20, 1
    %p80 = por %p78, %p79
    %p81 = scmp.ne.s32.totalorder %s72, %s73
    %p82 = scmp.eq.s32.totalorder %s20, 0
    %p83 = por %p81, %p82
    %p84 = scmp.ne.s32.totalorder %s72, %s73
    %p85 = scmp.eq.s32.totalorder %s21, 1
    %p86 = por %p84, %p85
    %p88 = scmp.ne.s32.totalorder %s73, %s87
    %p89 = scmp.eq.s32.totalorder %s21, 0
    %p90 = por %p88, %p89
    %s92 = sadd.s32 %s91, 1
    %p95 = scmp.eq.s32.totalorder %s15, 1
    %p96 = scmp.ne.s32.totalorder %s91, %s93
    %p97 = scmp.eq.s32.totalorder %s15, 0
    %p98 = por %p96, %p97
    %p99 = scmp.ne.s32.totalorder %s91, %s93
    %p100 = scmp.eq.s32.totalorder %s20, 1
    %p101 = por %p99, %p100
    %p102 = scmp.ne.s32.totalorder %s93, %s94
    %p103 = scmp.eq.s32.totalorder %s20, 0
    %p104 = por %p102, %p103
    %p105 = scmp.ne.s32.totalorder %s93, %s94
    %p106 = scmp.eq.s32.totalorder %s21, 1
    %p107 = por %p105, %p106
    %p109 = scmp.ne.s32.totalorder %s94, %s108
    %p110 = scmp.eq.s32.totalorder %s21, 0
    %p111 = por %p109, %p110
    %s113 = sadd.s32 %s112, 1
    %p116 = scmp.eq.s32.totalorder %s15, 1
    %p117 = scmp.ne.s32.totalorder %s112, %s114
    %p118 = scmp.eq.s32.totalorder %s15, 0
    %p119 = por %p117, %p118
    %p120 = scmp.ne.s32.totalorder %s112, %s114
    %p121 = scmp.eq.s32.totalorder %s20, 1
    %p122 = por %p120, %p121
    %p123 = scmp.ne.s32.totalorder %s114, %s115
    %p124 = scmp.eq.s32.totalorder %s20, 0
    %p125 = por %p123, %p124
    %p126 = scmp.ne.s32.totalorder %s114, %s115
    %p127 = scmp.eq.s32.totalorder %s21, 1
    %p128 = por %p126, %p127
    %p130 = scmp.ne.s32.totalorder %s115, %s129
    %p131 = scmp.eq.s32.totalorder %s21, 0
    %p132 = por %p130, %p131
    %s134 = sadd.s32 %s133, 1
    %p137 = scmp.eq.s32.totalorder %s15, 1
    %p138 = scmp.ne.s32.totalorder %s133, %s135
    %p139 = scmp.eq.s32.totalorder %s15, 0
    %p140 = por %p138, %p139
    %p141 = scmp.ne.s32.totalorder %s133, %s135
    %p142 = scmp.eq.s32.totalorder %s20, 1
    %p143 = por %p141, %p142
    %p144 = scmp.ne.s32.totalorder %s135, %s136
    %p145 = scmp.eq.s32.totalorder %s20, 0
    %p146 = por %p144, %p145
    %p147 = scmp.ne.s32.totalorder %s135, %s136
    %p148 = scmp.eq.s32.totalorder %s21, 1
    %p149 = por %p147, %p148
    %p151 = scmp.ne.s32.totalorder %s136, %s150
    %p152 = scmp.eq.s32.totalorder %s21, 0
    %p153 = por %p151, %p152
    %s155 = sadd.s32 %s154, 1
    %p158 = scmp.eq.s32.totalorder %s15, 1
    %p159 = scmp.ne.s32.totalorder %s154, %s156
    %p160 = scmp.eq.s32.totalorder %s15, 0
    %p161 = por %p159, %p160
    %p162 = scmp.ne.s32.totalorder %s154, %s156
    %p163 = scmp.eq.s32.totalorder %s20, 1
    %p164 = por %p162, %p163
    %p165 = scmp.ne.s32.totalorder %s156, %s157
    %p166 = scmp.eq.s32.totalorder %s20, 0
    %p167 = por %p165, %p166
    %p168 = scmp.ne.s32.totalorder %s156, %s157
    %p169 = scmp.eq.s32.totalorder %s21, 1
    %p170 = por %p168, %p169
    %p172 = scmp.ne.s32.totalorder %s157, %s171
    %p173 = scmp.eq.s32.totalorder %s21, 0
    %p174 = por %p172, %p173
    %s176 = sadd.s32 %s175, 1
    %p179 = scmp.eq.s32.totalorder %s15, 1
    %p180 = scmp.ne.s32.totalorder %s175, %s177
    %p181 = scmp.eq.s32.totalorder %s15, 0
    %p182 = por %p180, %p181
    %p183 = scmp.ne.s32.totalorder %s175, %s177
    %p184 = scmp.eq.s32.totalorder %s20, 1
    %p185 = por %p183, %p184
    %p186 = scmp.ne.s32.totalorder %s177, %s178
    %p187 = scmp.eq.s32.totalorder %s20, 0
    %p188 = por %p186, %p187
    %p189 = scmp.ne.s32.totalorder %s177, %s178
    %p190 = scmp.eq.s32.totalorder %s21, 1
    %p191 = por %p189, %p190
    %p193 = scmp.ne.s32.totalorder %s178, %s192
    %p194 = scmp.eq.s32.totalorder %s21, 0
    %p195 = por %p193, %p194
    %s197 = sadd.s32 %s196, 1
    %p200 = scmp.eq.s32.totalorder %s15, 1
    %p201 = scmp.ne.s32.totalorder %s196, %s198
    %p202 = scmp.eq.s32.totalorder %s15, 0
    %p203 = por %p201, %p202
    %p204 = scmp.ne.s32.totalorder %s196, %s198
    %p205 = scmp.eq.s32.totalorder %s20, 1
    %p206 = por %p204, %p205
    %p207 = scmp.ne.s32.totalorder %s198, %s199
    %p208 = scmp.eq.s32.totalorder %s20, 0
    %p209 = por %p207, %p208
    %p210 = scmp.ne.s32.totalorder %s198, %s199
    %p211 = scmp.eq.s32.totalorder %s21, 1
    %p212 = por %p210, %p211
    %p214 = scmp.ne.s32.totalorder %s199, %s213
    %p215 = scmp.eq.s32.totalorder %s21, 0
    %p216 = por %p214, %p215
    %s217 = ssub.s32 %s15, %s22
    %p218 = scmp.eq.s32.totalorder %s217, 0
    %s220 = sadd.s32 %s219, 1
    %s221 = scalar_select %p218, %s219, %s220
    %p224 = pneg %p218
    %p225 = scmp.eq.s32.totalorder %s15, 1
    %p226 = por %p224, %p225
    %p227 = scmp.ne.s32.totalorder %s219, %s222
    %p228 = scmp.eq.s32.totalorder %s15, 0
    %p229 = por %p227, %p228
    %p230 = scmp.ne.s32.totalorder %s219, %s222
    %p231 = scmp.eq.s32.totalorder %s20, 1
    %p232 = por %p230, %p231
    %p233 = scmp.ne.s32.totalorder %s222, %s223
    %p234 = scmp.eq.s32.totalorder %s20, 0
    %p235 = por %p233, %p234
    %p236 = scmp.ne.s32.totalorder %s222, %s223
    %p237 = scmp.eq.s32.totalorder %s21, 1
    %p238 = por %p236, %p237
    %p240 = scmp.ne.s32.totalorder %s223, %s239
    %p241 = scmp.eq.s32.totalorder %s21, 0
    %p242 = por %p240, %p241
    %p243 = scmp.le.s32.totalorder 1, %s15
    %p244 = scmp.lt.s32.totalorder %s15, 3
    %p245 = pnand %p243, %p244
    %p246 = pneg %p245
    // Predicated region
    $region9: #{cnn_forward.2} parent=5 // pred_check
      _
    $region10: #{cnn_forward.2} parent=5 // pred_check_branch
      %248 = sbr.rel (%p245) target = $region12
    $region11: #{cnn_forward.2} parent=5 // pred_region
      %s249 = ssub.s32 %s15, 1
      // Predicated region
      $region13: #{cnn_forward.2} parent=11 // pred_check
        %p250 = pneg %p62
      $region14: #{cnn_forward.2} parent=11 // pred_check_branch
        %252 = sbr.rel (%p250) target = $region16
      $region15: #{cnn_forward.2} parent=11 // pred_region
        _
      $region16: #{cnn_forward.2} parent=11 // pred_fallthru
        _
      // Predicated region
      $region17: #{cnn_forward.2} parent=11 // pred_check
        %p253 = pneg %p83
      $region18: #{cnn_forward.2} parent=11 // pred_check_branch
        %255 = sbr.rel (%p253) target = $region20
      $region19: #{cnn_forward.2} parent=11 // pred_region
        _
      $region20: #{cnn_forward.2} parent=11 // pred_fallthru
        _
      // Predicated region
      $region21: #{cnn_forward.2} parent=11 // pred_check
        %p256 = pneg %p104
      $region22: #{cnn_forward.2} parent=11 // pred_check_branch
        %258 = sbr.rel (%p256) target = $region24
      $region23: #{cnn_forward.2} parent=11 // pred_region
        _
      $region24: #{cnn_forward.2} parent=11 // pred_fallthru
        _
      // Predicated region
      $region25: #{cnn_forward.2} parent=11 // pred_check
        %p259 = pneg %p125
      $region26: #{cnn_forward.2} parent=11 // pred_check_branch
        %261 = sbr.rel (%p259) target = $region28
      $region27: #{cnn_forward.2} parent=11 // pred_region
        _
      $region28: #{cnn_forward.2} parent=11 // pred_fallthru
        _
      // Predicated region
      $region29: #{cnn_forward.2} parent=11 // pred_check
        %p262 = pneg %p146
      $region30: #{cnn_forward.2} parent=11 // pred_check_branch
        %264 = sbr.rel (%p262) target = $region32
      $region31: #{cnn_forward.2} parent=11 // pred_region
        _
      $region32: #{cnn_forward.2} parent=11 // pred_fallthru
        _
      // Predicated region
      $region33: #{cnn_forward.2} parent=11 // pred_check
        %p265 = pneg %p167
      $region34: #{cnn_forward.2} parent=11 // pred_check_branch
        %267 = sbr.rel (%p265) target = $region36
      $region35: #{cnn_forward.2} parent=11 // pred_region
        _
      $region36: #{cnn_forward.2} parent=11 // pred_fallthru
        _
      // Predicated region
      $region37: #{cnn_forward.2} parent=11 // pred_check
        %p268 = pneg %p188
      $region38: #{cnn_forward.2} parent=11 // pred_check_branch
        %270 = sbr.rel (%p268) target = $region40
      $region39: #{cnn_forward.2} parent=11 // pred_region
        _
      $region40: #{cnn_forward.2} parent=11 // pred_fallthru
        _
      // Predicated region
      $region41: #{cnn_forward.2} parent=11 // pred_check
        %p271 = pneg %p209
      $region42: #{cnn_forward.2} parent=11 // pred_check_branch
        %273 = sbr.rel (%p271) target = $region44
      $region43: #{cnn_forward.2} parent=11 // pred_region
        _
      $region44: #{cnn_forward.2} parent=11 // pred_fallthru
        _
    $region12: #{cnn_forward.2} parent=5 // pred_fallthru
      _
    %p274 = scmp.lt.s32.totalorder %s15, 2
    // Predicated region
    $region45: #{cnn_forward.2} parent=5 // pred_check
      %p275 = pneg %p274
    $region46: #{cnn_forward.2} parent=5 // pred_check_branch
      %277 = sbr.rel (%p275) target = $region48
    $region47: #{cnn_forward.2} parent=5 // pred_region
      // Predicated region
      $region49: #{cnn_forward.2} parent=47 // pred_check
        %p278 = pneg %p35
      $region50: #{cnn_forward.2} parent=47 // pred_check_branch
        %280 = sbr.rel (%p278) target = $region52
      $region51: #{cnn_forward.2} parent=47 // pred_region
        %p281 = scmp.lt.s32.totalorder %s15, 1
        %s282 = scalar_select %p281, %s15, 1
        %s283 = smul.addr %s282, 10
        %s284 = smul.addr %s283, 8
        %s285 = scalar_lea.vmem %s0, %s284
      $region52: #{cnn_forward.2} parent=47 // pred_fallthru
        _
    $region48: #{cnn_forward.2} parent=5 // pred_fallthru
      _
    %p286 = scmp.le.s32.totalorder 1, %s15
    %p287 = scmp.lt.s32.totalorder %s15, 3
    %p288 = pnand %p286, %p287
    %p289 = pneg %p288
    // Predicated region
    $region53: #{cnn_forward.2} parent=5 // pred_check
      _
    $region54: #{cnn_forward.2} parent=5 // pred_check_branch
      %291 = sbr.rel (%p288) target = $region56
    $region55: #{cnn_forward.2} parent=5 // pred_region
      %s292 = ssub.s32 %s15, 1
      %p293 = scmp.lt.s32.totalorder %s20, 1
      %s294 = scalar_select %p293, %s20, 1
      %s295 = smul.addr %s294, 10
      %s296 = smul.addr %s295, 8
      %s297 = scalar_lea.vmem %s0, %s296
      %p298 = pneg %p41
      %p299 = pneg %p38
      %p300 = pneg %p62
      %p301 = pneg %p59
      %p302 = pneg %p83
      %p303 = pneg %p80
      %p304 = pneg %p104
      %p305 = pneg %p101
      %p306 = pneg %p125
      %p307 = pneg %p122
      %p308 = pneg %p146
      %p309 = pneg %p143
      %p310 = pneg %p167
      %p311 = pneg %p164
      %p312 = pneg %p188
      %p313 = pneg %p185
      %p314 = pneg %p209
      %p315 = pneg %p206
      %p316 = pneg %p235
      %p317 = pneg %p232
      %p318 = scmp.lt.s32.totalorder %s20, 1
      %s319 = scalar_select %p318, %s20, 1
      %s320 = smul.addr %s319, 8
      %s321 = scalar_lea.vmem %s9, %s320
      %p322 = scmp.lt.s32.totalorder %s20, 1
      %s323 = scalar_select %p322, %s20, 1
      %s324 = smul.addr %s323, 10
      %s325 = smul.addr %s324, 8
      %s326 = scalar_lea.vmem %s0, %s325
      %p327 = scmp.lt.s32.totalorder %s20, 1
      %s328 = scalar_select %p327, %s20, 1
      %s329 = smul.addr %s328, 8
      %s330 = scalar_lea.vmem %s9, %s329
      %v331 = vld [vmem:[%s326] sm:$0xff]
      %v332 = vld [vmem:[%s326 + $0x8] sm:$0xff]
      %v333 = vld [vmem:[%s326 + $0x10] sm:$0xff]
      %v334 = vld [vmem:[%s326 + $0x18] sm:$0xff]
      %v335 = vld [vmem:[%s326 + $0x20] sm:$0xff]
      %v336 = vld [vmem:[%s326 + $0x28] sm:$0xff]
      %v337 = vld [vmem:[%s326 + $0x30] sm:$0xff]
      %v338 = vld [vmem:[%s326 + $0x38] sm:$0xff]
      %v339 = vld [vmem:[%s326 + $0x40] sm:$0xff]
      %v340 = vld [vmem:[%s326 + $0x48] sm:$0xff]
      %v341 = vld [vmem:[%s1] sm:$0xff]
      %v342 = vld [vmem:[%s1 + $0x8] sm:$0x1]
      %v343 = vld [vmem:[%s2] sm:$0x1]
      %v345 = vperm.slane %v343, 0
      %vm347 = vcmask 72704
      %v349 = vsel %vm347, %v331, 0
      %v352 = vsel %vm347, %v332, 0
      %v355 = vsel %vm347, %v333, 0
      %v358 = vsel %vm347, %v334, 0
      %v361 = vsel %vm347, %v335, 0
      %v364 = vsel %vm347, %v336, 0
      %v367 = vsel %vm347, %v337, 0
      %v370 = vsel %vm347, %v338, 0
      %v373 = vsel %vm347, %v339, 0
      %v376 = vsel %vm347, %v340, 0
      %vm378 = vcmask 1040384
      %v380 = vsel %vm378, %v342, 0
      %382 = vmatpush.msra.mxu0 0.0
      %383 = vmatpush.msra.mxu0 0.0
      %384 = vmatpush.msra.mxu0 0.0
      %385 = vmatpush.msra.mxu0 0.0
      %386 = vmatpush.msra.mxu0 0.0
      %387 = vmatpush.msra.mxu0 0.0
      %388 = vmatpush.msra.mxu0 0.0
      %389 = vmatpush.msra.mxu0 0.0
      %390 = vmatpush.msra.mxu0 0.0
      %391 = vmatpush.msra.mxu0 0.0
      %392 = vmatpush.msra.mxu0 0.0
      %393 = vmatpush.msra.mxu0 0.0
      %394 = vmatpush.msra.mxu0 0.0
      %395 = vmatpush.msra.mxu0 0.0
      %396 = vmatpush.msra.mxu0 %v380
      %397 = vmatpush.msra.mxu0 %v341
      %398 = vmatmul.f32.gmra.mxu0 %v349
      %v399 = vpop.f32.mrf.mxu0
      %v400 = vadd.f32 %v345, %v399
      %401 = vmatmul.f32.gmra.mxu0 %v352
      %v402 = vpop.f32.mrf.mxu0
      %v403 = vadd.f32 %v345, %v402
      %404 = vmatmul.f32.gmra.mxu0 %v355
      %v405 = vpop.f32.mrf.mxu0
      %v406 = vadd.f32 %v345, %v405
      %407 = vmatmul.f32.gmra.mxu0 %v358
      %v408 = vpop.f32.mrf.mxu0
      %v409 = vadd.f32 %v345, %v408
      %410 = vmatmul.f32.gmra.mxu0 %v361
      %v411 = vpop.f32.mrf.mxu0
      %v412 = vadd.f32 %v345, %v411
      %413 = vmatmul.f32.gmra.mxu0 %v364
      %v414 = vpop.f32.mrf.mxu0
      %v415 = vadd.f32 %v345, %v414
      %416 = vmatmul.f32.gmra.mxu0 %v367
      %v417 = vpop.f32.mrf.mxu0
      %v418 = vadd.f32 %v345, %v417
      %419 = vmatmul.f32.gmra.mxu0 %v370
      %v420 = vpop.f32.mrf.mxu0
      %v421 = vadd.f32 %v345, %v420
      %422 = vmatmul.f32.gmra.mxu0 %v373
      %v423 = vpop.f32.mrf.mxu0
      %v424 = vadd.f32 %v345, %v423
      %425 = vmatmul.f32.gmra.mxu0 %v376
      %v426 = vpop.f32.mrf.mxu0
      %v427 = vadd.f32 %v345, %v426
      %428 = vdwg.mxu0
      %v429 = vmax.f32 %v400, 0.0
      %v430 = vmax.f32 %v403, 0.0
      %v431 = vmax.f32 %v406, 0.0
      %v432 = vmax.f32 %v409, 0.0
      %v433 = vmax.f32 %v412, 0.0
      %v434 = vmax.f32 %v415, 0.0
      %v435 = vmax.f32 %v418, 0.0
      %v436 = vmax.f32 %v421, 0.0
      %v437 = vmax.f32 %v424, 0.0
      %v438 = vmax.f32 %v427, 0.0
      %v439 = vld [vmem:[%s3] sm:$0xff]
      %v440 = vld [vmem:[%s3 + $0x8] sm:$0xff]
      %v441 = vld [vmem:[%s3 + $0x10] sm:$0xf]
      %vm442 = vcmask 654336
      %v444 = vsel %vm442, %v439, 0
      %v447 = vsel %vm442, %v440, 0
      %v450 = vsel %vm442, %v441, 0
      %452 = vmatpush.msra.mxu0 0.0
      %453 = vmatpush.msra.mxu0 0.0
      %454 = vmatpush.msra.mxu0 0.0
      %455 = vmatpush.msra.mxu0 0.0
      %456 = vmatpush.msra.mxu0 0.0
      %457 = vmatpush.msra.mxu0 0.0
      %458 = vmatpush.msra.mxu0 %v438
      %459 = vmatpush.msra.mxu0 %v437
      %460 = vmatpush.msra.mxu0 %v436
      %461 = vmatpush.msra.mxu0 %v435
      %462 = vmatpush.msra.mxu0 %v434
      %463 = vmatpush.msra.mxu0 %v433
      %464 = vmatpush.msra.mxu0 %v432
      %465 = vmatpush.msra.mxu0 %v431
      %466 = vmatpush.msra.mxu0 %v430
      %467 = vmatpush.msra.mxu0 %v429
      %468 = vmatmul.f32.gmra.mxu0 %v444
      %v469 = vpop.f32.mrf.mxu0
      %v470 = vadd.f32 0.0, %v469
      %471 = vmatmul.f32.gmra.mxu0 %v447
      %v472 = vpop.f32.mrf.mxu0
      %v473 = vadd.f32 0.0, %v472
      %474 = vmatmul.f32.gmra.mxu0 %v450
      %v475 = vpop.f32.mrf.mxu0
      %v476 = vadd.f32 0.0, %v475
      %477 = vdwg.mxu0
      %v478 = vld [vmem:[%s4] sm:$0xff]
      %v479 = vld [vmem:[%s4 + $0x8] sm:$0xff]
      %s480 = scalar_lea.vmem %s3, 24
      %v481 = vld [vmem:[%s480] sm:$0xff]
      %v482 = vld [vmem:[%s480 + $0x8] sm:$0xff]
      %v483 = vld [vmem:[%s480 + $0x10] sm:$0xf]
      %v485 = vsel %vm442, %v481, 0
      %v488 = vsel %vm442, %v482, 0
      %v491 = vsel %vm442, %v483, 0
      %493 = vmatpush.msra.mxu0 0.0
      %494 = vmatpush.msra.mxu0 0.0
      %495 = vmatpush.msra.mxu0 0.0
      %496 = vmatpush.msra.mxu0 0.0
      %497 = vmatpush.msra.mxu0 0.0
      %498 = vmatpush.msra.mxu0 0.0
      %499 = vmatpush.msra.mxu0 %v438
      %500 = vmatpush.msra.mxu0 %v437
      %501 = vmatpush.msra.mxu0 %v436
      %502 = vmatpush.msra.mxu0 %v435
      %503 = vmatpush.msra.mxu0 %v434
      %504 = vmatpush.msra.mxu0 %v433
      %505 = vmatpush.msra.mxu0 %v432
      %506 = vmatpush.msra.mxu0 %v431
      %507 = vmatpush.msra.mxu0 %v430
      %508 = vmatpush.msra.mxu0 %v429
      %509 = vmatmul.f32.gmra.mxu0 %v485
      %v510 = vpop.f32.mrf.mxu0
      %v511 = vadd.f32 0.0, %v510
      %512 = vmatmul.f32.gmra.mxu0 %v488
      %v513 = vpop.f32.mrf.mxu0
      %v514 = vadd.f32 0.0, %v513
      %515 = vmatmul.f32.gmra.mxu0 %v491
      %v516 = vpop.f32.mrf.mxu0
      %v517 = vadd.f32 0.0, %v516
      %518 = vdwg.mxu0
      %s519 = scalar_lea.vmem %s4, 16
      %v520 = vld [vmem:[%s519] sm:$0xff]
      %v521 = vld [vmem:[%s519 + $0x8] sm:$0xff]
      %vm522 = vcmask 130048
      %v524 = vsel %vm522, %v511, 0
      %v527 = vsel %vm522, %v514, 0
      %v530 = vsel %vm522, %v517, 0
      %532 = vmatpush.msra.mxu0 0.0
      %533 = vmatpush.msra.mxu0 0.0
      %534 = vmatpush.msra.mxu0 0.0
      %535 = vmatpush.msra.mxu0 0.0
      %536 = vmatpush.msra.mxu0 0.0
      %537 = vmatpush.msra.mxu0 0.0
      %538 = vmatpush.msra.mxu0 0.0
      %539 = vmatpush.msra.mxu0 0.0
      %540 = vmatpush.msra.mxu0 0.0
      %541 = vmatpush.msra.mxu0 0.0
      %542 = vmatpush.msra.mxu0 0.0
      %543 = vmatpush.msra.mxu0 0.0
      %544 = vmatpush.msra.mxu0 0.0
      %545 = vmatpush.msra.mxu0 0.0
      %546 = vmatpush.msra.mxu0 %v521
      %547 = vmatpush.msra.mxu0 %v520
      %548 = vmatmul.f32.gmra.mxu0 %v524
      %v549 = vpop.f32.mrf.mxu0
      %v550 = vadd.f32 0.0, %v549
      %551 = vmatmul.f32.gmra.mxu0 %v527
      %v552 = vpop.f32.mrf.mxu0
      %v553 = vadd.f32 0.0, %v552
      %554 = vmatmul.f32.gmra.mxu0 %v530
      %v555 = vpop.f32.mrf.mxu0
      %v556 = vadd.f32 0.0, %v555
      %557 = vdwg.mxu0
      %v559 = vsel %vm522, %v470, 0
      %v562 = vsel %vm522, %v473, 0
      %v565 = vsel %vm522, %v476, 0
      %567 = vmatpush.msra.mxu0 0.0
      %568 = vmatpush.msra.mxu0 0.0
      %569 = vmatpush.msra.mxu0 0.0
      %570 = vmatpush.msra.mxu0 0.0
      %571 = vmatpush.msra.mxu0 0.0
      %572 = vmatpush.msra.mxu0 0.0
      %573 = vmatpush.msra.mxu0 0.0
      %574 = vmatpush.msra.mxu0 0.0
      %575 = vmatpush.msra.mxu0 0.0
      %576 = vmatpush.msra.mxu0 0.0
      %577 = vmatpush.msra.mxu0 0.0
      %578 = vmatpush.msra.mxu0 0.0
      %579 = vmatpush.msra.mxu0 0.0
      %580 = vmatpush.msra.mxu0 0.0
      %581 = vmatpush.msra.mxu0 %v479
      %582 = vmatpush.msra.mxu0 %v478
      %583 = vmatmul.f32.gmra.mxu0 %v559
      %v584 = vpop.f32.mrf.mxu0
      %v585 = vadd.f32 %v550, %v584
      %586 = vmatmul.f32.gmra.mxu0 %v562
      %v587 = vpop.f32.mrf.mxu0
      %v588 = vadd.f32 %v553, %v587
      %589 = vmatmul.f32.gmra.mxu0 %v565
      %v590 = vpop.f32.mrf.mxu0
      %v591 = vadd.f32 %v556, %v590
      %592 = vdwg.mxu0
      %s593 = scalar_lea.vmem %s3, 48
      %v594 = vld [vmem:[%s593] sm:$0xff]
      %v595 = vld [vmem:[%s593 + $0x8] sm:$0xff]
      %v596 = vld [vmem:[%s593 + $0x10] sm:$0xf]
      %v598 = vsel %vm442, %v594, 0
      %v601 = vsel %vm442, %v595, 0
      %v604 = vsel %vm442, %v596, 0
      %606 = vmatpush.msra.mxu0 0.0
      %607 = vmatpush.msra.mxu0 0.0
      %608 = vmatpush.msra.mxu0 0.0
      %609 = vmatpush.msra.mxu0 0.0
      %610 = vmatpush.msra.mxu0 0.0
      %611 = vmatpush.msra.mxu0 0.0
      %612 = vmatpush.msra.mxu0 %v438
      %613 = vmatpush.msra.mxu0 %v437
      %614 = vmatpush.msra.mxu0 %v436
      %615 = vmatpush.msra.mxu0 %v435
      %616 = vmatpush.msra.mxu0 %v434
      %617 = vmatpush.msra.mxu0 %v433
      %618 = vmatpush.msra.mxu0 %v432
      %619 = vmatpush.msra.mxu0 %v431
      %620 = vmatpush.msra.mxu0 %v430
      %621 = vmatpush.msra.mxu0 %v429
      %622 = vmatmul.f32.gmra.mxu0 %v598
      %v623 = vpop.f32.mrf.mxu0
      %v624 = vadd.f32 0.0, %v623
      %625 = vmatmul.f32.gmra.mxu0 %v601
      %v626 = vpop.f32.mrf.mxu0
      %v627 = vadd.f32 0.0, %v626
      %628 = vmatmul.f32.gmra.mxu0 %v604
      %v629 = vpop.f32.mrf.mxu0
      %v630 = vadd.f32 0.0, %v629
      %631 = vdwg.mxu0
      %s632 = scalar_lea.vmem %s4, 32
      %v633 = vld [vmem:[%s632] sm:$0xff]
      %v634 = vld [vmem:[%s632 + $0x8] sm:$0xff]
      %v636 = vsel %vm522, %v624, 0
      %v639 = vsel %vm522, %v627, 0
      %v642 = vsel %vm522, %v630, 0
      %644 = vmatpush.msra.mxu0 0.0
      %645 = vmatpush.msra.mxu0 0.0
      %646 = vmatpush.msra.mxu0 0.0
      %647 = vmatpush.msra.mxu0 0.0
      %648 = vmatpush.msra.mxu0 0.0
      %649 = vmatpush.msra.mxu0 0.0
      %650 = vmatpush.msra.mxu0 0.0
      %651 = vmatpush.msra.mxu0 0.0
      %652 = vmatpush.msra.mxu0 0.0
      %653 = vmatpush.msra.mxu0 0.0
      %654 = vmatpush.msra.mxu0 0.0
      %655 = vmatpush.msra.mxu0 0.0
      %656 = vmatpush.msra.mxu0 0.0
      %657 = vmatpush.msra.mxu0 0.0
      %658 = vmatpush.msra.mxu0 %v634
      %659 = vmatpush.msra.mxu0 %v633
      %660 = vmatmul.f32.gmra.mxu0 %v636
      %v661 = vpop.f32.mrf.mxu0
      %v662 = vadd.f32 0.0, %v661
      %663 = vmatmul.f32.gmra.mxu0 %v639
      %v664 = vpop.f32.mrf.mxu0
      %v665 = vadd.f32 0.0, %v664
      %666 = vmatmul.f32.gmra.mxu0 %v642
      %v667 = vpop.f32.mrf.mxu0
      %v668 = vadd.f32 0.0, %v667
      %669 = vdwg.mxu0
      %v670 = vadd.f32 %v585, %v662
      %v671 = vadd.f32 %v588, %v665
      %v672 = vadd.f32 %v591, %v668
      %s673 = scalar_lea.vmem %s3, 72
      %v674 = vld [vmem:[%s673] sm:$0xff]
      %v675 = vld [vmem:[%s673 + $0x8] sm:$0xff]
      %v676 = vld [vmem:[%s673 + $0x10] sm:$0xf]
      %v678 = vsel %vm442, %v674, 0
      %v681 = vsel %vm442, %v675, 0
      %v684 = vsel %vm442, %v676, 0
      %686 = vmatpush.msra.mxu0 0.0
      %687 = vmatpush.msra.mxu0 0.0
      %688 = vmatpush.msra.mxu0 0.0
      %689 = vmatpush.msra.mxu0 0.0
      %690 = vmatpush.msra.mxu0 0.0
      %691 = vmatpush.msra.mxu0 0.0
      %692 = vmatpush.msra.mxu0 %v438
      %693 = vmatpush.msra.mxu0 %v437
      %694 = vmatpush.msra.mxu0 %v436
      %695 = vmatpush.msra.mxu0 %v435
      %696 = vmatpush.msra.mxu0 %v434
      %697 = vmatpush.msra.mxu0 %v433
      %698 = vmatpush.msra.mxu0 %v432
      %699 = vmatpush.msra.mxu0 %v431
      %700 = vmatpush.msra.mxu0 %v430
      %701 = vmatpush.msra.mxu0 %v429
      %702 = vmatmul.f32.gmra.mxu0 %v678
      %v703 = vpop.f32.mrf.mxu0
      %v704 = vadd.f32 0.0, %v703
      %705 = vmatmul.f32.gmra.mxu0 %v681
      %v706 = vpop.f32.mrf.mxu0
      %v707 = vadd.f32 0.0, %v706
      %708 = vmatmul.f32.gmra.mxu0 %v684
      %v709 = vpop.f32.mrf.mxu0
      %v710 = vadd.f32 0.0, %v709
      %711 = vdwg.mxu0
      %s712 = scalar_lea.vmem %s4, 48
      %v713 = vld [vmem:[%s712] sm:$0xff]
      %v714 = vld [vmem:[%s712 + $0x8] sm:$0xff]
      %v716 = vsel %vm522, %v704, 0
      %v719 = vsel %vm522, %v707, 0
      %v722 = vsel %vm522, %v710, 0
      %724 = vmatpush.msra.mxu0 0.0
      %725 = vmatpush.msra.mxu0 0.0
      %726 = vmatpush.msra.mxu0 0.0
      %727 = vmatpush.msra.mxu0 0.0
      %728 = vmatpush.msra.mxu0 0.0
      %729 = vmatpush.msra.mxu0 0.0
      %730 = vmatpush.msra.mxu0 0.0
      %731 = vmatpush.msra.mxu0 0.0
      %732 = vmatpush.msra.mxu0 0.0
      %733 = vmatpush.msra.mxu0 0.0
      %734 = vmatpush.msra.mxu0 0.0
      %735 = vmatpush.msra.mxu0 0.0
      %736 = vmatpush.msra.mxu0 0.0
      %737 = vmatpush.msra.mxu0 0.0
      %738 = vmatpush.msra.mxu0 %v714
      %739 = vmatpush.msra.mxu0 %v713
      %740 = vmatmul.f32.gmra.mxu0 %v716
      %v741 = vpop.f32.mrf.mxu0
      %v742 = vadd.f32 0.0, %v741
      %743 = vmatmul.f32.gmra.mxu0 %v719
      %v744 = vpop.f32.mrf.mxu0
      %v745 = vadd.f32 0.0, %v744
      %746 = vmatmul.f32.gmra.mxu0 %v722
      %v747 = vpop.f32.mrf.mxu0
      %v748 = vadd.f32 0.0, %v747
      %749 = vdwg.mxu0
      %v750 = vadd.f32 %v670, %v742
      %v751 = vadd.f32 %v671, %v745
      %v752 = vadd.f32 %v672, %v748
      %s753 = scalar_lea.vmem %s3, 96
      %v754 = vld [vmem:[%s753] sm:$0xff]
      %v755 = vld [vmem:[%s753 + $0x8] sm:$0xff]
      %v756 = vld [vmem:[%s753 + $0x10] sm:$0xf]
      %v758 = vsel %vm442, %v754, 0
      %v761 = vsel %vm442, %v755, 0
      %v764 = vsel %vm442, %v756, 0
      %766 = vmatpush.msra.mxu0 0.0
      %767 = vmatpush.msra.mxu0 0.0
      %768 = vmatpush.msra.mxu0 0.0
      %769 = vmatpush.msra.mxu0 0.0
      %770 = vmatpush.msra.mxu0 0.0
      %771 = vmatpush.msra.mxu0 0.0
      %772 = vmatpush.msra.mxu0 %v438
      %773 = vmatpush.msra.mxu0 %v437
      %774 = vmatpush.msra.mxu0 %v436
      %775 = vmatpush.msra.mxu0 %v435
      %776 = vmatpush.msra.mxu0 %v434
      %777 = vmatpush.msra.mxu0 %v433
      %778 = vmatpush.msra.mxu0 %v432
      %779 = vmatpush.msra.mxu0 %v431
      %780 = vmatpush.msra.mxu0 %v430
      %781 = vmatpush.msra.mxu0 %v429
      %782 = vmatmul.f32.gmra.mxu0 %v758
      %v783 = vpop.f32.mrf.mxu0
      %v784 = vadd.f32 0.0, %v783
      %785 = vmatmul.f32.gmra.mxu0 %v761
      %v786 = vpop.f32.mrf.mxu0
      %v787 = vadd.f32 0.0, %v786
      %788 = vmatmul.f32.gmra.mxu0 %v764
      %v789 = vpop.f32.mrf.mxu0
      %v790 = vadd.f32 0.0, %v789
      %791 = vdwg.mxu0
      %s792 = scalar_lea.vmem %s4, 64
      %v793 = vld [vmem:[%s792] sm:$0xff]
      %v794 = vld [vmem:[%s792 + $0x8] sm:$0xff]
      %v796 = vsel %vm522, %v784, 0
      %v799 = vsel %vm522, %v787, 0
      %v802 = vsel %vm522, %v790, 0
      %804 = vmatpush.msra.mxu0 0.0
      %805 = vmatpush.msra.mxu0 0.0
      %806 = vmatpush.msra.mxu0 0.0
      %807 = vmatpush.msra.mxu0 0.0
      %808 = vmatpush.msra.mxu0 0.0
      %809 = vmatpush.msra.mxu0 0.0
      %810 = vmatpush.msra.mxu0 0.0
      %811 = vmatpush.msra.mxu0 0.0
      %812 = vmatpush.msra.mxu0 0.0
      %813 = vmatpush.msra.mxu0 0.0
      %814 = vmatpush.msra.mxu0 0.0
      %815 = vmatpush.msra.mxu0 0.0
      %816 = vmatpush.msra.mxu0 0.0
      %817 = vmatpush.msra.mxu0 0.0
      %818 = vmatpush.msra.mxu0 %v794
      %819 = vmatpush.msra.mxu0 %v793
      %820 = vmatmul.f32.gmra.mxu0 %v796
      %v821 = vpop.f32.mrf.mxu0
      %v822 = vadd.f32 0.0, %v821
      %823 = vmatmul.f32.gmra.mxu0 %v799
      %v824 = vpop.f32.mrf.mxu0
      %v825 = vadd.f32 0.0, %v824
      %826 = vmatmul.f32.gmra.mxu0 %v802
      %v827 = vpop.f32.mrf.mxu0
      %v828 = vadd.f32 0.0, %v827
      %829 = vdwg.mxu0
      %v830 = vadd.f32 %v750, %v822
      %v831 = vadd.f32 %v751, %v825
      %v832 = vadd.f32 %v752, %v828
      %s833 = scalar_lea.vmem %s3, 120
      %v834 = vld [vmem:[%s833] sm:$0xff]
      %v835 = vld [vmem:[%s833 + $0x8] sm:$0xff]
      %v836 = vld [vmem:[%s833 + $0x10] sm:$0xf]
      %v838 = vsel %vm442, %v834, 0
      %v841 = vsel %vm442, %v835, 0
      %v844 = vsel %vm442, %v836, 0
      %846 = vmatpush.msra.mxu0 0.0
      %847 = vmatpush.msra.mxu0 0.0
      %848 = vmatpush.msra.mxu0 0.0
      %849 = vmatpush.msra.mxu0 0.0
      %850 = vmatpush.msra.mxu0 0.0
      %851 = vmatpush.msra.mxu0 0.0
      %852 = vmatpush.msra.mxu0 %v438
      %853 = vmatpush.msra.mxu0 %v437
      %854 = vmatpush.msra.mxu0 %v436
      %855 = vmatpush.msra.mxu0 %v435
      %856 = vmatpush.msra.mxu0 %v434
      %857 = vmatpush.msra.mxu0 %v433
      %858 = vmatpush.msra.mxu0 %v432
      %859 = vmatpush.msra.mxu0 %v431
      %860 = vmatpush.msra.mxu0 %v430
      %861 = vmatpush.msra.mxu0 %v429
      %862 = vmatmul.f32.gmra.mxu0 %v838
      %v863 = vpop.f32.mrf.mxu0
      %v864 = vadd.f32 0.0, %v863
      %865 = vmatmul.f32.gmra.mxu0 %v841
      %v866 = vpop.f32.mrf.mxu0
      %v867 = vadd.f32 0.0, %v866
      %868 = vmatmul.f32.gmra.mxu0 %v844
      %v869 = vpop.f32.mrf.mxu0
      %v870 = vadd.f32 0.0, %v869
      %871 = vdwg.mxu0
      %s872 = scalar_lea.vmem %s4, 80
      %v873 = vld [vmem:[%s872] sm:$0xff]
      %v874 = vld [vmem:[%s872 + $0x8] sm:$0xff]
      %v876 = vsel %vm522, %v864, 0
      %v879 = vsel %vm522, %v867, 0
      %v882 = vsel %vm522, %v870, 0
      %884 = vmatpush.msra.mxu0 0.0
      %885 = vmatpush.msra.mxu0 0.0
      %886 = vmatpush.msra.mxu0 0.0
      %887 = vmatpush.msra.mxu0 0.0
      %888 = vmatpush.msra.mxu0 0.0
      %889 = vmatpush.msra.mxu0 0.0
      %890 = vmatpush.msra.mxu0 0.0
      %891 = vmatpush.msra.mxu0 0.0
      %892 = vmatpush.msra.mxu0 0.0
      %893 = vmatpush.msra.mxu0 0.0
      %894 = vmatpush.msra.mxu0 0.0
      %895 = vmatpush.msra.mxu0 0.0
      %896 = vmatpush.msra.mxu0 0.0
      %897 = vmatpush.msra.mxu0 0.0
      %898 = vmatpush.msra.mxu0 %v874
      %899 = vmatpush.msra.mxu0 %v873
      %900 = vmatmul.f32.gmra.mxu0 %v876
      %v901 = vpop.f32.mrf.mxu0
      %v902 = vadd.f32 0.0, %v901
      %903 = vmatmul.f32.gmra.mxu0 %v879
      %v904 = vpop.f32.mrf.mxu0
      %v905 = vadd.f32 0.0, %v904
      %906 = vmatmul.f32.gmra.mxu0 %v882
      %v907 = vpop.f32.mrf.mxu0
      %v908 = vadd.f32 0.0, %v907
      %909 = vdwg.mxu0
      %v910 = vadd.f32 %v830, %v902
      %v911 = vadd.f32 %v831, %v905
      %v912 = vadd.f32 %v832, %v908
      %s913 = scalar_lea.vmem %s3, 144
      %v914 = vld [vmem:[%s913] sm:$0xff]
      %v915 = vld [vmem:[%s913 + $0x8] sm:$0xff]
      %v916 = vld [vmem:[%s913 + $0x10] sm:$0xf]
      %v918 = vsel %vm442, %v914, 0
      %v921 = vsel %vm442, %v915, 0
      %v924 = vsel %vm442, %v916, 0
      %926 = vmatpush.msra.mxu0 0.0
      %927 = vmatpush.msra.mxu0 0.0
      %928 = vmatpush.msra.mxu0 0.0
      %929 = vmatpush.msra.mxu0 0.0
      %930 = vmatpush.msra.mxu0 0.0
      %931 = vmatpush.msra.mxu0 0.0
      %932 = vmatpush.msra.mxu0 %v438
      %933 = vmatpush.msra.mxu0 %v437
      %934 = vmatpush.msra.mxu0 %v436
      %935 = vmatpush.msra.mxu0 %v435
      %936 = vmatpush.msra.mxu0 %v434
      %937 = vmatpush.msra.mxu0 %v433
      %938 = vmatpush.msra.mxu0 %v432
      %939 = vmatpush.msra.mxu0 %v431
      %940 = vmatpush.msra.mxu0 %v430
      %941 = vmatpush.msra.mxu0 %v429
      %942 = vmatmul.f32.gmra.mxu0 %v918
      %v943 = vpop.f32.mrf.mxu0
      %v944 = vadd.f32 0.0, %v943
      %945 = vmatmul.f32.gmra.mxu0 %v921
      %v946 = vpop.f32.mrf.mxu0
      %v947 = vadd.f32 0.0, %v946
      %948 = vmatmul.f32.gmra.mxu0 %v924
      %v949 = vpop.f32.mrf.mxu0
      %v950 = vadd.f32 0.0, %v949
      %951 = vdwg.mxu0
      %s952 = scalar_lea.vmem %s4, 96
      %v953 = vld [vmem:[%s952] sm:$0xff]
      %v954 = vld [vmem:[%s952 + $0x8] sm:$0xff]
      %v956 = vsel %vm522, %v944, 0
      %v959 = vsel %vm522, %v947, 0
      %v962 = vsel %vm522, %v950, 0
      %964 = vmatpush.msra.mxu0 0.0
      %965 = vmatpush.msra.mxu0 0.0
      %966 = vmatpush.msra.mxu0 0.0
      %967 = vmatpush.msra.mxu0 0.0
      %968 = vmatpush.msra.mxu0 0.0
      %969 = vmatpush.msra.mxu0 0.0
      %970 = vmatpush.msra.mxu0 0.0
      %971 = vmatpush.msra.mxu0 0.0
      %972 = vmatpush.msra.mxu0 0.0
      %973 = vmatpush.msra.mxu0 0.0
      %974 = vmatpush.msra.mxu0 0.0
      %975 = vmatpush.msra.mxu0 0.0
      %976 = vmatpush.msra.mxu0 0.0
      %977 = vmatpush.msra.mxu0 0.0
      %978 = vmatpush.msra.mxu0 %v954
      %979 = vmatpush.msra.mxu0 %v953
      %980 = vmatmul.f32.gmra.mxu0 %v956
      %v981 = vpop.f32.mrf.mxu0
      %v982 = vadd.f32 0.0, %v981
      %983 = vmatmul.f32.gmra.mxu0 %v959
      %v984 = vpop.f32.mrf.mxu0
      %v985 = vadd.f32 0.0, %v984
      %986 = vmatmul.f32.gmra.mxu0 %v962
      %v987 = vpop.f32.mrf.mxu0
      %v988 = vadd.f32 0.0, %v987
      %989 = vdwg.mxu0
      %v990 = vadd.f32 %v910, %v982
      %v991 = vadd.f32 %v911, %v985
      %v992 = vadd.f32 %v912, %v988
      %s993 = scalar_lea.vmem %s3, 168
      %v994 = vld [vmem:[%s993] sm:$0xff]
      %v995 = vld [vmem:[%s993 + $0x8] sm:$0xff]
      %v996 = vld [vmem:[%s993 + $0x10] sm:$0xf]
      %v998 = vsel %vm442, %v994, 0
      %v1001 = vsel %vm442, %v995, 0
      %v1004 = vsel %vm442, %v996, 0
      %1006 = vmatpush.msra.mxu0 0.0
      %1007 = vmatpush.msra.mxu0 0.0
      %1008 = vmatpush.msra.mxu0 0.0
      %1009 = vmatpush.msra.mxu0 0.0
      %1010 = vmatpush.msra.mxu0 0.0
      %1011 = vmatpush.msra.mxu0 0.0
      %1012 = vmatpush.msra.mxu0 %v438
      %1013 = vmatpush.msra.mxu0 %v437
      %1014 = vmatpush.msra.mxu0 %v436
      %1015 = vmatpush.msra.mxu0 %v435
      %1016 = vmatpush.msra.mxu0 %v434
      %1017 = vmatpush.msra.mxu0 %v433
      %1018 = vmatpush.msra.mxu0 %v432
      %1019 = vmatpush.msra.mxu0 %v431
      %1020 = vmatpush.msra.mxu0 %v430
      %1021 = vmatpush.msra.mxu0 %v429
      %1022 = vmatmul.f32.gmra.mxu0 %v998
      %v1023 = vpop.f32.mrf.mxu0
      %v1024 = vadd.f32 0.0, %v1023
      %1025 = vmatmul.f32.gmra.mxu0 %v1001
      %v1026 = vpop.f32.mrf.mxu0
      %v1027 = vadd.f32 0.0, %v1026
      %1028 = vmatmul.f32.gmra.mxu0 %v1004
      %v1029 = vpop.f32.mrf.mxu0
      %v1030 = vadd.f32 0.0, %v1029
      %1031 = vdwg.mxu0
      %s1032 = scalar_lea.vmem %s4, 112
      %v1033 = vld [vmem:[%s1032] sm:$0xff]
      %v1034 = vld [vmem:[%s1032 + $0x8] sm:$0xff]
      %v1036 = vsel %vm522, %v1024, 0
      %v1039 = vsel %vm522, %v1027, 0
      %v1042 = vsel %vm522, %v1030, 0
      %1044 = vmatpush.msra.mxu0 0.0
      %1045 = vmatpush.msra.mxu0 0.0
      %1046 = vmatpush.msra.mxu0 0.0
      %1047 = vmatpush.msra.mxu0 0.0
      %1048 = vmatpush.msra.mxu0 0.0
      %1049 = vmatpush.msra.mxu0 0.0
      %1050 = vmatpush.msra.mxu0 0.0
      %1051 = vmatpush.msra.mxu0 0.0
      %1052 = vmatpush.msra.mxu0 0.0
      %1053 = vmatpush.msra.mxu0 0.0
      %1054 = vmatpush.msra.mxu0 0.0
      %1055 = vmatpush.msra.mxu0 0.0
      %1056 = vmatpush.msra.mxu0 0.0
      %1057 = vmatpush.msra.mxu0 0.0
      %1058 = vmatpush.msra.mxu0 %v1034
      %1059 = vmatpush.msra.mxu0 %v1033
      %1060 = vmatmul.f32.gmra.mxu0 %v1036
      %v1061 = vpop.f32.mrf.mxu0
      %v1062 = vadd.f32 0.0, %v1061
      %1063 = vmatmul.f32.gmra.mxu0 %v1039
      %v1064 = vpop.f32.mrf.mxu0
      %v1065 = vadd.f32 0.0, %v1064
      %1066 = vmatmul.f32.gmra.mxu0 %v1042
      %v1067 = vpop.f32.mrf.mxu0
      %v1068 = vadd.f32 0.0, %v1067
      %1069 = vdwg.mxu0
      %v1070 = vadd.f32 %v990, %v1062
      %v1071 = vadd.f32 %v991, %v1065
      %v1072 = vadd.f32 %v992, %v1068
      %s1073 = scalar_lea.vmem %s3, 192
      %v1074 = vld [vmem:[%s1073] sm:$0xff]
      %v1075 = vld [vmem:[%s1073 + $0x8] sm:$0xff]
      %v1076 = vld [vmem:[%s1073 + $0x10] sm:$0xf]
      %v1078 = vsel %vm442, %v1074, 0
      %v1081 = vsel %vm442, %v1075, 0
      %v1084 = vsel %vm442, %v1076, 0
      %1086 = vmatpush.msra.mxu0 0.0
      %1087 = vmatpush.msra.mxu0 0.0
      %1088 = vmatpush.msra.mxu0 0.0
      %1089 = vmatpush.msra.mxu0 0.0
      %1090 = vmatpush.msra.mxu0 0.0
      %1091 = vmatpush.msra.mxu0 0.0
      %1092 = vmatpush.msra.mxu0 %v438
      %1093 = vmatpush.msra.mxu0 %v437
      %1094 = vmatpush.msra.mxu0 %v436
      %1095 = vmatpush.msra.mxu0 %v435
      %1096 = vmatpush.msra.mxu0 %v434
      %1097 = vmatpush.msra.mxu0 %v433
      %1098 = vmatpush.msra.mxu0 %v432
      %1099 = vmatpush.msra.mxu0 %v431
      %1100 = vmatpush.msra.mxu0 %v430
      %1101 = vmatpush.msra.mxu0 %v429
      %1102 = vmatmul.f32.gmra.mxu0 %v1078
      %v1103 = vpop.f32.mrf.mxu0
      %v1104 = vadd.f32 0.0, %v1103
      %1105 = vmatmul.f32.gmra.mxu0 %v1081
      %v1106 = vpop.f32.mrf.mxu0
      %v1107 = vadd.f32 0.0, %v1106
      %1108 = vmatmul.f32.gmra.mxu0 %v1084
      %v1109 = vpop.f32.mrf.mxu0
      %v1110 = vadd.f32 0.0, %v1109
      %1111 = vdwg.mxu0
      %s1112 = scalar_lea.vmem %s4, 128
      %v1113 = vld [vmem:[%s1112] sm:$0xff]
      %v1114 = vld [vmem:[%s1112 + $0x8] sm:$0xff]
      %v1116 = vsel %vm522, %v1104, 0
      %v1119 = vsel %vm522, %v1107, 0
      %v1122 = vsel %vm522, %v1110, 0
      %1124 = vmatpush.msra.mxu0 0.0
      %1125 = vmatpush.msra.mxu0 0.0
      %1126 = vmatpush.msra.mxu0 0.0
      %1127 = vmatpush.msra.mxu0 0.0
      %1128 = vmatpush.msra.mxu0 0.0
      %1129 = vmatpush.msra.mxu0 0.0
      %1130 = vmatpush.msra.mxu0 0.0
      %1131 = vmatpush.msra.mxu0 0.0
      %1132 = vmatpush.msra.mxu0 0.0
      %1133 = vmatpush.msra.mxu0 0.0
      %1134 = vmatpush.msra.mxu0 0.0
      %1135 = vmatpush.msra.mxu0 0.0
      %1136 = vmatpush.msra.mxu0 0.0
      %1137 = vmatpush.msra.mxu0 0.0
      %1138 = vmatpush.msra.mxu0 %v1114
      %1139 = vmatpush.msra.mxu0 %v1113
      %1140 = vmatmul.f32.gmra.mxu0 %v1116
      %v1141 = vpop.f32.mrf.mxu0
      %v1142 = vadd.f32 0.0, %v1141
      %1143 = vmatmul.f32.gmra.mxu0 %v1119
      %v1144 = vpop.f32.mrf.mxu0
      %v1145 = vadd.f32 0.0, %v1144
      %1146 = vmatmul.f32.gmra.mxu0 %v1122
      %v1147 = vpop.f32.mrf.mxu0
      %v1148 = vadd.f32 0.0, %v1147
      %1149 = vdwg.mxu0
      %v1150 = vadd.f32 %v1070, %v1142
      %v1151 = vadd.f32 %v1071, %v1145
      %v1152 = vadd.f32 %v1072, %v1148
      %v1153 = vld [vmem:[%s5] sm:$0x1]
      %v1155 = vperm.slane %v1153, 0
      %v1157 = vadd.f32 %v1150, %v1155
      %v1158 = vadd.f32 %v1151, %v1155
      %v1159 = vadd.f32 %v1152, %v1155
      %v1160 = vmax.f32 %v1157, 0.0
      %v1161 = vmax.f32 %v1158, 0.0
      %v1162 = vmax.f32 %v1159, 0.0
      %v1163 = vld [vmem:[%s6] sm:$0x1f]
      %vm1164 = vcmask 162816
      %v1166 = vsel %vm1164, %v1163, 0
      %vm1168 = vcmask 1043456
      %v1170 = vsel %vm1168, %v1162, 0
      %1172 = vmatpush.msra.mxu0 0.0
      %1173 = vmatpush.msra.mxu0 0.0
      %1174 = vmatpush.msra.mxu0 0.0
      %1175 = vmatpush.msra.mxu0 0.0
      %1176 = vmatpush.msra.mxu0 0.0
      %1177 = vmatpush.msra.mxu0 0.0
      %1178 = vmatpush.msra.mxu0 0.0
      %1179 = vmatpush.msra.mxu0 0.0
      %1180 = vmatpush.msra.mxu0 0.0
      %1181 = vmatpush.msra.mxu0 0.0
      %1182 = vmatpush.msra.mxu0 0.0
      %1183 = vmatpush.msra.mxu0 0.0
      %1184 = vmatpush.msra.mxu0 0.0
      %1185 = vmatpush.msra.mxu0 %v1170
      %1186 = vmatpush.msra.mxu0 %v1161
      %1187 = vmatpush.msra.mxu0 %v1160
      %1188 = vmatmul.f32.gmra.mxu0 %v1166
      %v1189 = vpop.f32.mrf.mxu0
      %v1190 = vadd.f32 0.0, %v1189
      %1191 = vdwg.mxu0
      %v1192 = vld [vmem:[%s7] sm:$0xff]
      %v1193 = vld [vmem:[%s7 + $0x8] sm:$0xff]
      %v1194 = vld [vmem:[%s7 + $0x10] sm:$0xff]
      %v1195 = vld [vmem:[%s7 + $0x18] sm:$0xff]
      %s1196 = scalar_lea.vmem %s6, 8
      %v1197 = vld [vmem:[%s1196] sm:$0x1f]
      %v1199 = vsel %vm1164, %v1197, 0
      %1201 = vmatpush.msra.mxu0 0.0
      %1202 = vmatpush.msra.mxu0 0.0
      %1203 = vmatpush.msra.mxu0 0.0
      %1204 = vmatpush.msra.mxu0 0.0
      %1205 = vmatpush.msra.mxu0 0.0
      %1206 = vmatpush.msra.mxu0 0.0
      %1207 = vmatpush.msra.mxu0 0.0
      %1208 = vmatpush.msra.mxu0 0.0
      %1209 = vmatpush.msra.mxu0 0.0
      %1210 = vmatpush.msra.mxu0 0.0
      %1211 = vmatpush.msra.mxu0 0.0
      %1212 = vmatpush.msra.mxu0 0.0
      %1213 = vmatpush.msra.mxu0 0.0
      %1214 = vmatpush.msra.mxu0 %v1170
      %1215 = vmatpush.msra.mxu0 %v1161
      %1216 = vmatpush.msra.mxu0 %v1160
      %1217 = vmatmul.f32.gmra.mxu0 %v1199
      %v1218 = vpop.f32.mrf.mxu0
      %v1219 = vadd.f32 0.0, %v1218
      %1220 = vdwg.mxu0
      %s1221 = scalar_lea.vmem %s7, 32
      %v1222 = vld [vmem:[%s1221] sm:$0xff]
      %v1223 = vld [vmem:[%s1221 + $0x8] sm:$0xff]
      %v1224 = vld [vmem:[%s1221 + $0x10] sm:$0xff]
      %v1225 = vld [vmem:[%s1221 + $0x18] sm:$0xff]
      %vm1226 = vcmask 261120
      %v1228 = vsel %vm1226, %v1219, 0
      %1230 = vmatpush.msra.mxu0 0.0
      %1231 = vmatpush.msra.mxu0 0.0
      %1232 = vmatpush.msra.mxu0 0.0
      %1233 = vmatpush.msra.mxu0 0.0
      %1234 = vmatpush.msra.mxu0 0.0
      %1235 = vmatpush.msra.mxu0 0.0
      %1236 = vmatpush.msra.mxu0 0.0
      %1237 = vmatpush.msra.mxu0 0.0
      %1238 = vmatpush.msra.mxu0 0.0
      %1239 = vmatpush.msra.mxu0 0.0
      %1240 = vmatpush.msra.mxu0 0.0
      %1241 = vmatpush.msra.mxu0 0.0
      %1242 = vmatpush.msra.mxu0 %v1225
      %1243 = vmatpush.msra.mxu0 %v1224
      %1244 = vmatpush.msra.mxu0 %v1223
      %1245 = vmatpush.msra.mxu0 %v1222
      %1246 = vmatmul.f32.gmra.mxu0 %v1228
      %v1247 = vpop.f32.mrf.mxu0
      %v1248 = vadd.f32 0.0, %v1247
      %1249 = vdwg.mxu0
      %v1251 = vsel %vm1226, %v1190, 0
      %1253 = vmatpush.msra.mxu0 0.0
      %1254 = vmatpush.msra.mxu0 0.0
      %1255 = vmatpush.msra.mxu0 0.0
      %1256 = vmatpush.msra.mxu0 0.0
      %1257 = vmatpush.msra.mxu0 0.0
      %1258 = vmatpush.msra.mxu0 0.0
      %1259 = vmatpush.msra.mxu0 0.0
      %1260 = vmatpush.msra.mxu0 0.0
      %1261 = vmatpush.msra.mxu0 0.0
      %1262 = vmatpush.msra.mxu0 0.0
      %1263 = vmatpush.msra.mxu0 0.0
      %1264 = vmatpush.msra.mxu0 0.0
      %1265 = vmatpush.msra.mxu0 %v1195
      %1266 = vmatpush.msra.mxu0 %v1194
      %1267 = vmatpush.msra.mxu0 %v1193
      %1268 = vmatpush.msra.mxu0 %v1192
      %1269 = vmatmul.f32.gmra.mxu0 %v1251
      %v1270 = vpop.f32.mrf.mxu0
      %v1271 = vadd.f32 %v1248, %v1270
      %1272 = vdwg.mxu0
      %s1273 = scalar_lea.vmem %s6, 16
      %v1274 = vld [vmem:[%s1273] sm:$0x1f]
      %v1276 = vsel %vm1164, %v1274, 0
      %1278 = vmatpush.msra.mxu0 0.0
      %1279 = vmatpush.msra.mxu0 0.0
      %1280 = vmatpush.msra.mxu0 0.0
      %1281 = vmatpush.msra.mxu0 0.0
      %1282 = vmatpush.msra.mxu0 0.0
      %1283 = vmatpush.msra.mxu0 0.0
      %1284 = vmatpush.msra.mxu0 0.0
      %1285 = vmatpush.msra.mxu0 0.0
      %1286 = vmatpush.msra.mxu0 0.0
      %1287 = vmatpush.msra.mxu0 0.0
      %1288 = vmatpush.msra.mxu0 0.0
      %1289 = vmatpush.msra.mxu0 0.0
      %1290 = vmatpush.msra.mxu0 0.0
      %1291 = vmatpush.msra.mxu0 %v1170
      %1292 = vmatpush.msra.mxu0 %v1161
      %1293 = vmatpush.msra.mxu0 %v1160
      %1294 = vmatmul.f32.gmra.mxu0 %v1276
      %v1295 = vpop.f32.mrf.mxu0
      %v1296 = vadd.f32 0.0, %v1295
      %1297 = vdwg.mxu0
      %s1298 = scalar_lea.vmem %s7, 64
      %v1299 = vld [vmem:[%s1298] sm:$0xff]
      %v1300 = vld [vmem:[%s1298 + $0x8] sm:$0xff]
      %v1301 = vld [vmem:[%s1298 + $0x10] sm:$0xff]
      %v1302 = vld [vmem:[%s1298 + $0x18] sm:$0xff]
      %v1304 = vsel %vm1226, %v1296, 0
      %1306 = vmatpush.msra.mxu0 0.0
      %1307 = vmatpush.msra.mxu0 0.0
      %1308 = vmatpush.msra.mxu0 0.0
      %1309 = vmatpush.msra.mxu0 0.0
      %1310 = vmatpush.msra.mxu0 0.0
      %1311 = vmatpush.msra.mxu0 0.0
      %1312 = vmatpush.msra.mxu0 0.0
      %1313 = vmatpush.msra.mxu0 0.0
      %1314 = vmatpush.msra.mxu0 0.0
      %1315 = vmatpush.msra.mxu0 0.0
      %1316 = vmatpush.msra.mxu0 0.0
      %1317 = vmatpush.msra.mxu0 0.0
      %1318 = vmatpush.msra.mxu0 %v1302
      %1319 = vmatpush.msra.mxu0 %v1301
      %1320 = vmatpush.msra.mxu0 %v1300
      %1321 = vmatpush.msra.mxu0 %v1299
      %1322 = vmatmul.f32.gmra.mxu0 %v1304
      %v1323 = vpop.f32.mrf.mxu0
      %v1324 = vadd.f32 0.0, %v1323
      %1325 = vdwg.mxu0
      %v1326 = vadd.f32 %v1271, %v1324
      %s1327 = scalar_lea.vmem %s6, 24
      %v1328 = vld [vmem:[%s1327] sm:$0x1f]
      %v1330 = vsel %vm1164, %v1328, 0
      %1332 = vmatpush.msra.mxu0 0.0
      %1333 = vmatpush.msra.mxu0 0.0
      %1334 = vmatpush.msra.mxu0 0.0
      %1335 = vmatpush.msra.mxu0 0.0
      %1336 = vmatpush.msra.mxu0 0.0
      %1337 = vmatpush.msra.mxu0 0.0
      %1338 = vmatpush.msra.mxu0 0.0
      %1339 = vmatpush.msra.mxu0 0.0
      %1340 = vmatpush.msra.mxu0 0.0
      %1341 = vmatpush.msra.mxu0 0.0
      %1342 = vmatpush.msra.mxu0 0.0
      %1343 = vmatpush.msra.mxu0 0.0
      %1344 = vmatpush.msra.mxu0 0.0
      %1345 = vmatpush.msra.mxu0 %v1170
      %1346 = vmatpush.msra.mxu0 %v1161
      %1347 = vmatpush.msra.mxu0 %v1160
      %1348 = vmatmul.f32.gmra.mxu0 %v1330
      %v1349 = vpop.f32.mrf.mxu0
      %v1350 = vadd.f32 0.0, %v1349
      %1351 = vdwg.mxu0
      %s1352 = scalar_lea.vmem %s7, 96
      %v1353 = vld [vmem:[%s1352] sm:$0xff]
      %v1354 = vld [vmem:[%s1352 + $0x8] sm:$0xff]
      %v1355 = vld [vmem:[%s1352 + $0x10] sm:$0xff]
      %v1356 = vld [vmem:[%s1352 + $0x18] sm:$0xff]
      %v1358 = vsel %vm1226, %v1350, 0
      %1360 = vmatpush.msra.mxu0 0.0
      %1361 = vmatpush.msra.mxu0 0.0
      %1362 = vmatpush.msra.mxu0 0.0
      %1363 = vmatpush.msra.mxu0 0.0
      %1364 = vmatpush.msra.mxu0 0.0
      %1365 = vmatpush.msra.mxu0 0.0
      %1366 = vmatpush.msra.mxu0 0.0
      %1367 = vmatpush.msra.mxu0 0.0
      %1368 = vmatpush.msra.mxu0 0.0
      %1369 = vmatpush.msra.mxu0 0.0
      %1370 = vmatpush.msra.mxu0 0.0
      %1371 = vmatpush.msra.mxu0 0.0
      %1372 = vmatpush.msra.mxu0 %v1356
      %1373 = vmatpush.msra.mxu0 %v1355
      %1374 = vmatpush.msra.mxu0 %v1354
      %1375 = vmatpush.msra.mxu0 %v1353
      %1376 = vmatmul.f32.gmra.mxu0 %v1358
      %v1377 = vpop.f32.mrf.mxu0
      %v1378 = vadd.f32 0.0, %v1377
      %1379 = vdwg.mxu0
      %v1380 = vadd.f32 %v1326, %v1378
      %s1381 = scalar_lea.vmem %s6, 32
      %v1382 = vld [vmem:[%s1381] sm:$0x1f]
      %v1384 = vsel %vm1164, %v1382, 0
      %1386 = vmatpush.msra.mxu0 0.0
      %1387 = vmatpush.msra.mxu0 0.0
      %1388 = vmatpush.msra.mxu0 0.0
      %1389 = vmatpush.msra.mxu0 0.0
      %1390 = vmatpush.msra.mxu0 0.0
      %1391 = vmatpush.msra.mxu0 0.0
      %1392 = vmatpush.msra.mxu0 0.0
      %1393 = vmatpush.msra.mxu0 0.0
      %1394 = vmatpush.msra.mxu0 0.0
      %1395 = vmatpush.msra.mxu0 0.0
      %1396 = vmatpush.msra.mxu0 0.0
      %1397 = vmatpush.msra.mxu0 0.0
      %1398 = vmatpush.msra.mxu0 0.0
      %1399 = vmatpush.msra.mxu0 %v1170
      %1400 = vmatpush.msra.mxu0 %v1161
      %1401 = vmatpush.msra.mxu0 %v1160
      %1402 = vmatmul.f32.gmra.mxu0 %v1384
      %v1403 = vpop.f32.mrf.mxu0
      %v1404 = vadd.f32 0.0, %v1403
      %1405 = vdwg.mxu0
      %s1406 = scalar_lea.vmem %s7, 128
      %v1407 = vld [vmem:[%s1406] sm:$0xff]
      %v1408 = vld [vmem:[%s1406 + $0x8] sm:$0xff]
      %v1409 = vld [vmem:[%s1406 + $0x10] sm:$0xff]
      %v1410 = vld [vmem:[%s1406 + $0x18] sm:$0xff]
      %v1412 = vsel %vm1226, %v1404, 0
      %1414 = vmatpush.msra.mxu0 0.0
      %1415 = vmatpush.msra.mxu0 0.0
      %1416 = vmatpush.msra.mxu0 0.0
      %1417 = vmatpush.msra.mxu0 0.0
      %1418 = vmatpush.msra.mxu0 0.0
      %1419 = vmatpush.msra.mxu0 0.0
      %1420 = vmatpush.msra.mxu0 0.0
      %1421 = vmatpush.msra.mxu0 0.0
      %1422 = vmatpush.msra.mxu0 0.0
      %1423 = vmatpush.msra.mxu0 0.0
      %1424 = vmatpush.msra.mxu0 0.0
      %1425 = vmatpush.msra.mxu0 0.0
      %1426 = vmatpush.msra.mxu0 %v1410
      %1427 = vmatpush.msra.mxu0 %v1409
      %1428 = vmatpush.msra.mxu0 %v1408
      %1429 = vmatpush.msra.mxu0 %v1407
      %1430 = vmatmul.f32.gmra.mxu0 %v1412
      %v1431 = vpop.f32.mrf.mxu0
      %v1432 = vadd.f32 0.0, %v1431
      %1433 = vdwg.mxu0
      %v1434 = vadd.f32 %v1380, %v1432
      %s1435 = scalar_lea.vmem %s6, 40
      %v1436 = vld [vmem:[%s1435] sm:$0x1f]
      %v1438 = vsel %vm1164, %v1436, 0
      %1440 = vmatpush.msra.mxu0 0.0
      %1441 = vmatpush.msra.mxu0 0.0
      %1442 = vmatpush.msra.mxu0 0.0
      %1443 = vmatpush.msra.mxu0 0.0
      %1444 = vmatpush.msra.mxu0 0.0
      %1445 = vmatpush.msra.mxu0 0.0
      %1446 = vmatpush.msra.mxu0 0.0
      %1447 = vmatpush.msra.mxu0 0.0
      %1448 = vmatpush.msra.mxu0 0.0
      %1449 = vmatpush.msra.mxu0 0.0
      %1450 = vmatpush.msra.mxu0 0.0
      %1451 = vmatpush.msra.mxu0 0.0
      %1452 = vmatpush.msra.mxu0 0.0
      %1453 = vmatpush.msra.mxu0 %v1170
      %1454 = vmatpush.msra.mxu0 %v1161
      %1455 = vmatpush.msra.mxu0 %v1160
      %1456 = vmatmul.f32.gmra.mxu0 %v1438
      %v1457 = vpop.f32.mrf.mxu0
      %v1458 = vadd.f32 0.0, %v1457
      %1459 = vdwg.mxu0
      %s1460 = scalar_lea.vmem %s7, 160
      %v1461 = vld [vmem:[%s1460] sm:$0xff]
      %v1462 = vld [vmem:[%s1460 + $0x8] sm:$0xff]
      %v1463 = vld [vmem:[%s1460 + $0x10] sm:$0xff]
      %v1464 = vld [vmem:[%s1460 + $0x18] sm:$0xff]
      %v1466 = vsel %vm1226, %v1458, 0
      %1468 = vmatpush.msra.mxu0 0.0
      %1469 = vmatpush.msra.mxu0 0.0
      %1470 = vmatpush.msra.mxu0 0.0
      %1471 = vmatpush.msra.mxu0 0.0
      %1472 = vmatpush.msra.mxu0 0.0
      %1473 = vmatpush.msra.mxu0 0.0
      %1474 = vmatpush.msra.mxu0 0.0
      %1475 = vmatpush.msra.mxu0 0.0
      %1476 = vmatpush.msra.mxu0 0.0
      %1477 = vmatpush.msra.mxu0 0.0
      %1478 = vmatpush.msra.mxu0 0.0
      %1479 = vmatpush.msra.mxu0 0.0
      %1480 = vmatpush.msra.mxu0 %v1464
      %1481 = vmatpush.msra.mxu0 %v1463
      %1482 = vmatpush.msra.mxu0 %v1462
      %1483 = vmatpush.msra.mxu0 %v1461
      %1484 = vmatmul.f32.gmra.mxu0 %v1466
      %v1485 = vpop.f32.mrf.mxu0
      %v1486 = vadd.f32 0.0, %v1485
      %1487 = vdwg.mxu0
      %v1488 = vadd.f32 %v1434, %v1486
      %s1489 = scalar_lea.vmem %s6, 48
      %v1490 = vld [vmem:[%s1489] sm:$0x1f]
      %v1492 = vsel %vm1164, %v1490, 0
      %1494 = vmatpush.msra.mxu0 0.0
      %1495 = vmatpush.msra.mxu0 0.0
      %1496 = vmatpush.msra.mxu0 0.0
      %1497 = vmatpush.msra.mxu0 0.0
      %1498 = vmatpush.msra.mxu0 0.0
      %1499 = vmatpush.msra.mxu0 0.0
      %1500 = vmatpush.msra.mxu0 0.0
      %1501 = vmatpush.msra.mxu0 0.0
      %1502 = vmatpush.msra.mxu0 0.0
      %1503 = vmatpush.msra.mxu0 0.0
      %1504 = vmatpush.msra.mxu0 0.0
      %1505 = vmatpush.msra.mxu0 0.0
      %1506 = vmatpush.msra.mxu0 0.0
      %1507 = vmatpush.msra.mxu0 %v1170
      %1508 = vmatpush.msra.mxu0 %v1161
      %1509 = vmatpush.msra.mxu0 %v1160
      %1510 = vmatmul.f32.gmra.mxu0 %v1492
      %v1511 = vpop.f32.mrf.mxu0
      %v1512 = vadd.f32 0.0, %v1511
      %1513 = vdwg.mxu0
      %s1514 = scalar_lea.vmem %s7, 192
      %v1515 = vld [vmem:[%s1514] sm:$0xff]
      %v1516 = vld [vmem:[%s1514 + $0x8] sm:$0xff]
      %v1517 = vld [vmem:[%s1514 + $0x10] sm:$0xff]
      %v1518 = vld [vmem:[%s1514 + $0x18] sm:$0xff]
      %v1520 = vsel %vm1226, %v1512, 0
      %1522 = vmatpush.msra.mxu0 0.0
      %1523 = vmatpush.msra.mxu0 0.0
      %1524 = vmatpush.msra.mxu0 0.0
      %1525 = vmatpush.msra.mxu0 0.0
      %1526 = vmatpush.msra.mxu0 0.0
      %1527 = vmatpush.msra.mxu0 0.0
      %1528 = vmatpush.msra.mxu0 0.0
      %1529 = vmatpush.msra.mxu0 0.0
      %1530 = vmatpush.msra.mxu0 0.0
      %1531 = vmatpush.msra.mxu0 0.0
      %1532 = vmatpush.msra.mxu0 0.0
      %1533 = vmatpush.msra.mxu0 0.0
      %1534 = vmatpush.msra.mxu0 %v1518
      %1535 = vmatpush.msra.mxu0 %v1517
      %1536 = vmatpush.msra.mxu0 %v1516
      %1537 = vmatpush.msra.mxu0 %v1515
      %1538 = vmatmul.f32.gmra.mxu0 %v1520
      %v1539 = vpop.f32.mrf.mxu0
      %v1540 = vadd.f32 0.0, %v1539
      %1541 = vdwg.mxu0
      %v1542 = vadd.f32 %v1488, %v1540
      %s1543 = scalar_lea.vmem %s6, 56
      %v1544 = vld [vmem:[%s1543] sm:$0x1f]
      %v1546 = vsel %vm1164, %v1544, 0
      %1548 = vmatpush.msra.mxu0 0.0
      %1549 = vmatpush.msra.mxu0 0.0
      %1550 = vmatpush.msra.mxu0 0.0
      %1551 = vmatpush.msra.mxu0 0.0
      %1552 = vmatpush.msra.mxu0 0.0
      %1553 = vmatpush.msra.mxu0 0.0
      %1554 = vmatpush.msra.mxu0 0.0
      %1555 = vmatpush.msra.mxu0 0.0
      %1556 = vmatpush.msra.mxu0 0.0
      %1557 = vmatpush.msra.mxu0 0.0
      %1558 = vmatpush.msra.mxu0 0.0
      %1559 = vmatpush.msra.mxu0 0.0
      %1560 = vmatpush.msra.mxu0 0.0
      %1561 = vmatpush.msra.mxu0 %v1170
      %1562 = vmatpush.msra.mxu0 %v1161
      %1563 = vmatpush.msra.mxu0 %v1160
      %1564 = vmatmul.f32.gmra.mxu0 %v1546
      %v1565 = vpop.f32.mrf.mxu0
      %v1566 = vadd.f32 0.0, %v1565
      %1567 = vdwg.mxu0
      %s1568 = scalar_lea.vmem %s7, 224
      %v1569 = vld [vmem:[%s1568] sm:$0xff]
      %v1570 = vld [vmem:[%s1568 + $0x8] sm:$0xff]
      %v1571 = vld [vmem:[%s1568 + $0x10] sm:$0xff]
      %v1572 = vld [vmem:[%s1568 + $0x18] sm:$0xff]
      %v1574 = vsel %vm1226, %v1566, 0
      %1576 = vmatpush.msra.mxu0 0.0
      %1577 = vmatpush.msra.mxu0 0.0
      %1578 = vmatpush.msra.mxu0 0.0
      %1579 = vmatpush.msra.mxu0 0.0
      %1580 = vmatpush.msra.mxu0 0.0
      %1581 = vmatpush.msra.mxu0 0.0
      %1582 = vmatpush.msra.mxu0 0.0
      %1583 = vmatpush.msra.mxu0 0.0
      %1584 = vmatpush.msra.mxu0 0.0
      %1585 = vmatpush.msra.mxu0 0.0
      %1586 = vmatpush.msra.mxu0 0.0
      %1587 = vmatpush.msra.mxu0 0.0
      %1588 = vmatpush.msra.mxu0 %v1572
      %1589 = vmatpush.msra.mxu0 %v1571
      %1590 = vmatpush.msra.mxu0 %v1570
      %1591 = vmatpush.msra.mxu0 %v1569
      %1592 = vmatmul.f32.gmra.mxu0 %v1574
      %v1593 = vpop.f32.mrf.mxu0
      %v1594 = vadd.f32 0.0, %v1593
      %1595 = vdwg.mxu0
      %v1596 = vadd.f32 %v1542, %v1594
      %s1597 = scalar_lea.vmem %s6, 64
      %v1598 = vld [vmem:[%s1597] sm:$0x1f]
      %v1600 = vsel %vm1164, %v1598, 0
      %1602 = vmatpush.msra.mxu0 0.0
      %1603 = vmatpush.msra.mxu0 0.0
      %1604 = vmatpush.msra.mxu0 0.0
      %1605 = vmatpush.msra.mxu0 0.0
      %1606 = vmatpush.msra.mxu0 0.0
      %1607 = vmatpush.msra.mxu0 0.0
      %1608 = vmatpush.msra.mxu0 0.0
      %1609 = vmatpush.msra.mxu0 0.0
      %1610 = vmatpush.msra.mxu0 0.0
      %1611 = vmatpush.msra.mxu0 0.0
      %1612 = vmatpush.msra.mxu0 0.0
      %1613 = vmatpush.msra.mxu0 0.0
      %1614 = vmatpush.msra.mxu0 0.0
      %1615 = vmatpush.msra.mxu0 %v1170
      %1616 = vmatpush.msra.mxu0 %v1161
      %1617 = vmatpush.msra.mxu0 %v1160
      %1618 = vmatmul.f32.gmra.mxu0 %v1600
      %v1619 = vpop.f32.mrf.mxu0
      %v1620 = vadd.f32 0.0, %v1619
      %1621 = vdwg.mxu0
      %s1622 = scalar_lea.vmem %s7, 256
      %v1623 = vld [vmem:[%s1622] sm:$0xff]
      %v1624 = vld [vmem:[%s1622 + $0x8] sm:$0xff]
      %v1625 = vld [vmem:[%s1622 + $0x10] sm:$0xff]
      %v1626 = vld [vmem:[%s1622 + $0x18] sm:$0xff]
      %v1628 = vsel %vm1226, %v1620, 0
      %1630 = vmatpush.msra.mxu0 0.0
      %1631 = vmatpush.msra.mxu0 0.0
      %1632 = vmatpush.msra.mxu0 0.0
      %1633 = vmatpush.msra.mxu0 0.0
      %1634 = vmatpush.msra.mxu0 0.0
      %1635 = vmatpush.msra.mxu0 0.0
      %1636 = vmatpush.msra.mxu0 0.0
      %1637 = vmatpush.msra.mxu0 0.0
      %1638 = vmatpush.msra.mxu0 0.0
      %1639 = vmatpush.msra.mxu0 0.0
      %1640 = vmatpush.msra.mxu0 0.0
      %1641 = vmatpush.msra.mxu0 0.0
      %1642 = vmatpush.msra.mxu0 %v1626
      %1643 = vmatpush.msra.mxu0 %v1625
      %1644 = vmatpush.msra.mxu0 %v1624
      %1645 = vmatpush.msra.mxu0 %v1623
      %1646 = vmatmul.f32.gmra.mxu0 %v1628
      %v1647 = vpop.f32.mrf.mxu0
      %v1648 = vadd.f32 0.0, %v1647
      %1649 = vdwg.mxu0
      %v1650 = vadd.f32 %v1596, %v1648
      %v1651 = vld [vmem:[%s8] sm:$0x1]
      %v1653 = vperm.slane %v1651, 0
      %v1655 = vadd.f32 %v1650, %v1653
      %v1656 = vmax.f32 %v1655, 0.0
      %vm1657 = vcmask 520192
      %1658 = vst.msk [vmem:[%s330] sm:$0x1f] %vm1657, %v1656
      %p1659 = scmp.lt.s32.totalorder %s20, 1
      %s1660 = scalar_select %p1659, %s20, 1
      %s1661 = smul.addr %s1660, 8
      %s1662 = scalar_lea.vmem %s9, %s1661
      // Predicated region
      $region57: #{cnn_forward.2} parent=55 // pred_check
        %p1663 = pneg %p232
      $region58: #{cnn_forward.2} parent=55 // pred_check_branch
        %1665 = sbr.rel (%p1663) target = $region60
      $region59: #{cnn_forward.2} parent=55 // pred_region
        _
      $region60: #{cnn_forward.2} parent=55 // pred_fallthru
        _
    $region56: #{cnn_forward.2} parent=5 // pred_fallthru
      _
    %p1666 = scmp.le.s32.totalorder 2, %s15
    // Predicated region
    $region61: #{cnn_forward.2} parent=5 // pred_check
      %p1667 = pneg %p1666
    $region62: #{cnn_forward.2} parent=5 // pred_check_branch
      %1669 = sbr.rel (%p1667) target = $region64
    $region63: #{cnn_forward.2} parent=5 // pred_region
      %s1670 = ssub.s32 %s15, 2
      // Predicated region
      $region65: #{cnn_forward.2} parent=63 // pred_check
        %p1671 = pneg %p238
      $region66: #{cnn_forward.2} parent=63 // pred_check_branch
        %1673 = sbr.rel (%p1671) target = $region68
      $region67: #{cnn_forward.2} parent=63 // pred_region
        %p1674 = scmp.lt.s32.totalorder %s21, 1
        %s1675 = scalar_select %p1674, %s21, 1
        %s1676 = smul.addr %s1675, 8
        %s1677 = scalar_lea.vmem %s9, %s1676
      $region68: #{cnn_forward.2} parent=63 // pred_fallthru
        _
    $region64: #{cnn_forward.2} parent=5 // pred_fallthru
      _
  $region6: #{cnn_forward.2} parent=0 // loop_footer
    %s19 = sadd.s32 1, %s15
  $region7: #{cnn_forward.2} parent=0 // loop_footer_branch
    %14 = sbr.rel target = $region3
  $region8: #{cnn_forward.2} parent=0 // loop_exit
    _

// kernel: cnn_forward.3
$region0: #{cnn_forward.3}
  #allocation0 [shape = 'u32[]', space=smem, size = 0x4, offset = 0x4, fixed_abs, tag = 'smem constant byte address 0x4 - core index']
  #allocation1 [shape = 'u32[72,128]{1,0:T(1,128)}', space=vmem, size = 0x9000, scoped, tag = 'internal scratch']
  %s0 = inlined_call_operand.vmem [shape: f32[16,40], index: 0, kind: input, shape index: {}]
  %s1 = inlined_call_operand.vmem [shape: f32[40,1024], index: 1, kind: input, shape index: {}]
  %s2 = inlined_call_operand.vmem [shape: f32[1,1024], index: 2, kind: input, shape index: {}]
  %s3 = inlined_call_operand.vmem [shape: f32[1024,32], index: 3, kind: input, shape index: {}]
  %s4 = inlined_call_operand.vmem [shape: f32[1,32], index: 4, kind: input, shape index: {}]
  %s5 = inlined_call_operand.hbm [shape: f32[16,32], index: 5, kind: output, shape index: {}]
  %s6 = sld [smem:[#allocation0]]
  $region30: #{cnn_forward.3} parent=0
    _
  %s8 = ssub.s32 1, %s6
  %s9 = scalar_select 0, %s8, %s6
  $region1: #{cnn_forward.3} parent=0
    #allocation2 [shape = 'u8[8192]{0}', space=vmem, size = 0x2000, scoped, tag = 'output window, operand 0, single buffered']
    #allocation3 [shape = 's32[1]{0}', space=sflag, size = 0x4, scoped, tag = 'scoped memory for cnn_forward.3']
    %10 = vsyncpa [#allocation3], 0
    // Predicated region
    $region2: #{cnn_forward.3} parent=1 // pred_check
      _
    $region3: #{cnn_forward.3} parent=1 // pred_check_branch
      %12 = sbr.rel (0) target = $region5
    $region4: #{cnn_forward.3} parent=1 // pred_region
      _
    $region5: #{cnn_forward.3} parent=1 // pred_fallthru
      _
    // Predicated region
    $region6: #{cnn_forward.3} parent=1 // pred_check
      _
    $region7: #{cnn_forward.3} parent=1 // pred_check_branch
      %14 = sbr.rel (0) target = $region9
    $region8: #{cnn_forward.3} parent=1 // pred_region
      _
    $region9: #{cnn_forward.3} parent=1 // pred_fallthru
      _
    // Predicated region
    $region10: #{cnn_forward.3} parent=1 // pred_check
      _
    $region11: #{cnn_forward.3} parent=1 // pred_check_branch
      %16 = sbr.rel (0) target = $region13
    $region12: #{cnn_forward.3} parent=1 // pred_region
      _
    $region13: #{cnn_forward.3} parent=1 // pred_fallthru
      _
    // Predicated region
    $region14: #{cnn_forward.3} parent=1 // pred_check
      _
    $region15: #{cnn_forward.3} parent=1 // pred_check_branch
      %18 = sbr.rel (0) target = $region17
    $region16: #{cnn_forward.3} parent=1 // pred_region
      _
    $region17: #{cnn_forward.3} parent=1 // pred_fallthru
      _
    // Predicated region
    $region18: #{cnn_forward.3} parent=1 // pred_check
      _
    $region19: #{cnn_forward.3} parent=1 // pred_check_branch
      %20 = sbr.rel (0) target = $region21
    $region20: #{cnn_forward.3} parent=1 // pred_region
      _
    $region21: #{cnn_forward.3} parent=1 // pred_fallthru
      _
    %v21 = vld [vmem:[%s0] sm:$0xff]
    %v22 = vld [vmem:[%s0 + $0x8] sm:$0xff]
    %v23 = vld [vmem:[%s1] sm:$0xff]
    %v24 = vld [vmem:[%s1 + $0x8] sm:$0xff]
    %v25 = vld [vmem:[%s1 + $0x10] sm:$0xff]
    %v26 = vld [vmem:[%s1 + $0x18] sm:$0xff]
    %v27 = vld [vmem:[%s1 + $0x20] sm:$0xff]
    %v28 = vld [vmem:[%s1 + $0x28] sm:$0xff]
    %v29 = vld [vmem:[%s1 + $0x30] sm:$0xff]
    %v30 = vld [vmem:[%s1 + $0x38] sm:$0xff]
    %v31 = vld [vmem:[%s1 + $0x40] sm:$0xff]
    %v32 = vld [vmem:[%s1 + $0x48] sm:$0xff]
    %v33 = vld [vmem:[%s1 + $0x50] sm:$0xff]
    %v34 = vld [vmem:[%s1 + $0x58] sm:$0xff]
    %v35 = vld [vmem:[%s1 + $0x60] sm:$0xff]
    %v36 = vld [vmem:[%s1 + $0x68] sm:$0xff]
    %v37 = vld [vmem:[%s1 + $0x70] sm:$0xff]
    %v38 = vld [vmem:[%s1 + $0x78] sm:$0xff]
    %v39 = vld [vmem:[%s1 + $0x80] sm:$0xff]
    %v40 = vld [vmem:[%s1 + $0x88] sm:$0xff]
    %v41 = vld [vmem:[%s1 + $0x90] sm:$0xff]
    %v42 = vld [vmem:[%s1 + $0x98] sm:$0xff]
    %v43 = vld [vmem:[%s1 + $0xa0] sm:$0xff]
    %v44 = vld [vmem:[%s1 + $0xa8] sm:$0xff]
    %v45 = vld [vmem:[%s1 + $0xb0] sm:$0xff]
    %v46 = vld [vmem:[%s1 + $0xb8] sm:$0xff]
    %v47 = vld [vmem:[%s1 + $0xc0] sm:$0xff]
    %v48 = vld [vmem:[%s1 + $0xc8] sm:$0xff]
    %v49 = vld [vmem:[%s1 + $0xd0] sm:$0xff]
    %v50 = vld [vmem:[%s1 + $0xd8] sm:$0xff]
    %v51 = vld [vmem:[%s1 + $0xe0] sm:$0xff]
    %v52 = vld [vmem:[%s1 + $0xe8] sm:$0xff]
    %v53 = vld [vmem:[%s1 + $0xf0] sm:$0xff]
    %v54 = vld [vmem:[%s1 + $0xf8] sm:$0xff]
    %v55 = vld [vmem:[%s1 + $0x100] sm:$0xff]
    %v56 = vld [vmem:[%s1 + $0x108] sm:$0xff]
    %v57 = vld [vmem:[%s1 + $0x110] sm:$0xff]
    %v58 = vld [vmem:[%s1 + $0x118] sm:$0xff]
    %v59 = vld [vmem:[%s1 + $0x120] sm:$0xff]
    %v60 = vld [vmem:[%s1 + $0x128] sm:$0xff]
    %v61 = vld [vmem:[%s1 + $0x130] sm:$0xff]
    %v62 = vld [vmem:[%s1 + $0x138] sm:$0xff]
    %v63 = vld [vmem:[%s2] sm:$0xff]
    %v65 = vperm.slane %v63, 0
    %v66 = vperm.slane %v63, 1
    %v67 = vperm.slane %v63, 2
    %v68 = vperm.slane %v63, 3
    %v69 = vperm.slane %v63, 4
    %v70 = vperm.slane %v63, 5
    %v71 = vperm.slane %v63, 6
    %v72 = vperm.slane %v63, 7
    %vm81 = vcmask 326656
    %v83 = vsel %vm81, %v21, 0
    %v86 = vsel %vm81, %v22, 0
    %88 = vmatpush.msra.mxu0 0.0
    %89 = vmatpush.msra.mxu0 0.0
    %90 = vmatpush.msra.mxu0 0.0
    %91 = vmatpush.msra.mxu0 0.0
    %92 = vmatpush.msra.mxu0 0.0
    %93 = vmatpush.msra.mxu0 0.0
    %94 = vmatpush.msra.mxu0 0.0
    %95 = vmatpush.msra.mxu0 0.0
    %96 = vmatpush.msra.mxu0 0.0
    %97 = vmatpush.msra.mxu0 0.0
    %98 = vmatpush.msra.mxu0 0.0
    %99 = vmatpush.msra.mxu0 %v55
    %100 = vmatpush.msra.mxu0 %v47
    %101 = vmatpush.msra.mxu0 %v39
    %102 = vmatpush.msra.mxu0 %v31
    %103 = vmatpush.msra.mxu0 %v23
    %104 = vmatmul.f32.gmra.mxu0 %v83
    %v105 = vpop.f32.mrf.mxu0
    %v106 = vadd.f32 %v65, %v105
    %107 = vmatmul.f32.gmra.mxu0 %v86
    %v108 = vpop.f32.mrf.mxu0
    %v109 = vadd.f32 %v65, %v108
    %110 = vdwg.mxu0
    %111 = vmatpush.msra.mxu0 0.0
    %112 = vmatpush.msra.mxu0 0.0
    %113 = vmatpush.msra.mxu0 0.0
    %114 = vmatpush.msra.mxu0 0.0
    %115 = vmatpush.msra.mxu0 0.0
    %116 = vmatpush.msra.mxu0 0.0
    %117 = vmatpush.msra.mxu0 0.0
    %118 = vmatpush.msra.mxu0 0.0
    %119 = vmatpush.msra.mxu0 0.0
    %120 = vmatpush.msra.mxu0 0.0
    %121 = vmatpush.msra.mxu0 0.0
    %122 = vmatpush.msra.mxu0 %v56
    %123 = vmatpush.msra.mxu0 %v48
    %124 = vmatpush.msra.mxu0 %v40
    %125 = vmatpush.msra.mxu0 %v32
    %126 = vmatpush.msra.mxu0 %v24
    %127 = vmatmul.f32.gmra.mxu0 %v83
    %v128 = vpop.f32.mrf.mxu0
    %v129 = vadd.f32 %v66, %v128
    %130 = vmatmul.f32.gmra.mxu0 %v86
    %v131 = vpop.f32.mrf.mxu0
    %v132 = vadd.f32 %v66, %v131
    %133 = vdwg.mxu0
    %134 = vmatpush.msra.mxu0 0.0
    %135 = vmatpush.msra.mxu0 0.0
    %136 = vmatpush.msra.mxu0 0.0
    %137 = vmatpush.msra.mxu0 0.0
    %138 = vmatpush.msra.mxu0 0.0
    %139 = vmatpush.msra.mxu0 0.0
    %140 = vmatpush.msra.mxu0 0.0
    %141 = vmatpush.msra.mxu0 0.0
    %142 = vmatpush.msra.mxu0 0.0
    %143 = vmatpush.msra.mxu0 0.0
    %144 = vmatpush.msra.mxu0 0.0
    %145 = vmatpush.msra.mxu0 %v57
    %146 = vmatpush.msra.mxu0 %v49
    %147 = vmatpush.msra.mxu0 %v41
    %148 = vmatpush.msra.mxu0 %v33
    %149 = vmatpush.msra.mxu0 %v25
    %150 = vmatmul.f32.gmra.mxu0 %v83
    %v151 = vpop.f32.mrf.mxu0
    %v152 = vadd.f32 %v67, %v151
    %153 = vmatmul.f32.gmra.mxu0 %v86
    %v154 = vpop.f32.mrf.mxu0
    %v155 = vadd.f32 %v67, %v154
    %156 = vdwg.mxu0
    %157 = vmatpush.msra.mxu0 0.0
    %158 = vmatpush.msra.mxu0 0.0
    %159 = vmatpush.msra.mxu0 0.0
    %160 = vmatpush.msra.mxu0 0.0
    %161 = vmatpush.msra.mxu0 0.0
    %162 = vmatpush.msra.mxu0 0.0
    %163 = vmatpush.msra.mxu0 0.0
    %164 = vmatpush.msra.mxu0 0.0
    %165 = vmatpush.msra.mxu0 0.0
    %166 = vmatpush.msra.mxu0 0.0
    %167 = vmatpush.msra.mxu0 0.0
    %168 = vmatpush.msra.mxu0 %v58
    %169 = vmatpush.msra.mxu0 %v50
    %170 = vmatpush.msra.mxu0 %v42
    %171 = vmatpush.msra.mxu0 %v34
    %172 = vmatpush.msra.mxu0 %v26
    %173 = vmatmul.f32.gmra.mxu0 %v83
    %v174 = vpop.f32.mrf.mxu0
    %v175 = vadd.f32 %v68, %v174
    %176 = vmatmul.f32.gmra.mxu0 %v86
    %v177 = vpop.f32.mrf.mxu0
    %v178 = vadd.f32 %v68, %v177
    %179 = vdwg.mxu0
    %180 = vmatpush.msra.mxu0 0.0
    %181 = vmatpush.msra.mxu0 0.0
    %182 = vmatpush.msra.mxu0 0.0
    %183 = vmatpush.msra.mxu0 0.0
    %184 = vmatpush.msra.mxu0 0.0
    %185 = vmatpush.msra.mxu0 0.0
    %186 = vmatpush.msra.mxu0 0.0
    %187 = vmatpush.msra.mxu0 0.0
    %188 = vmatpush.msra.mxu0 0.0
    %189 = vmatpush.msra.mxu0 0.0
    %190 = vmatpush.msra.mxu0 0.0
    %191 = vmatpush.msra.mxu0 %v59
    %192 = vmatpush.msra.mxu0 %v51
    %193 = vmatpush.msra.mxu0 %v43
    %194 = vmatpush.msra.mxu0 %v35
    %195 = vmatpush.msra.mxu0 %v27
    %196 = vmatmul.f32.gmra.mxu0 %v83
    %v197 = vpop.f32.mrf.mxu0
    %v198 = vadd.f32 %v69, %v197
    %199 = vmatmul.f32.gmra.mxu0 %v86
    %v200 = vpop.f32.mrf.mxu0
    %v201 = vadd.f32 %v69, %v200
    %202 = vdwg.mxu0
    %203 = vmatpush.msra.mxu0 0.0
    %204 = vmatpush.msra.mxu0 0.0
    %205 = vmatpush.msra.mxu0 0.0
    %206 = vmatpush.msra.mxu0 0.0
    %207 = vmatpush.msra.mxu0 0.0
    %208 = vmatpush.msra.mxu0 0.0
    %209 = vmatpush.msra.mxu0 0.0
    %210 = vmatpush.msra.mxu0 0.0
    %211 = vmatpush.msra.mxu0 0.0
    %212 = vmatpush.msra.mxu0 0.0
    %213 = vmatpush.msra.mxu0 0.0
    %214 = vmatpush.msra.mxu0 %v60
    %215 = vmatpush.msra.mxu0 %v52
    %216 = vmatpush.msra.mxu0 %v44
    %217 = vmatpush.msra.mxu0 %v36
    %218 = vmatpush.msra.mxu0 %v28
    %219 = vmatmul.f32.gmra.mxu0 %v83
    %v220 = vpop.f32.mrf.mxu0
    %v221 = vadd.f32 %v70, %v220
    %222 = vmatmul.f32.gmra.mxu0 %v86
    %v223 = vpop.f32.mrf.mxu0
    %v224 = vadd.f32 %v70, %v223
    %225 = vdwg.mxu0
    %226 = vmatpush.msra.mxu0 0.0
    %227 = vmatpush.msra.mxu0 0.0
    %228 = vmatpush.msra.mxu0 0.0
    %229 = vmatpush.msra.mxu0 0.0
    %230 = vmatpush.msra.mxu0 0.0
    %231 = vmatpush.msra.mxu0 0.0
    %232 = vmatpush.msra.mxu0 0.0
    %233 = vmatpush.msra.mxu0 0.0
    %234 = vmatpush.msra.mxu0 0.0
    %235 = vmatpush.msra.mxu0 0.0
    %236 = vmatpush.msra.mxu0 0.0
    %237 = vmatpush.msra.mxu0 %v61
    %238 = vmatpush.msra.mxu0 %v53
    %239 = vmatpush.msra.mxu0 %v45
    %240 = vmatpush.msra.mxu0 %v37
    %241 = vmatpush.msra.mxu0 %v29
    %242 = vmatmul.f32.gmra.mxu0 %v83
    %v243 = vpop.f32.mrf.mxu0
    %v244 = vadd.f32 %v71, %v243
    %245 = vmatmul.f32.gmra.mxu0 %v86
    %v246 = vpop.f32.mrf.mxu0
    %v247 = vadd.f32 %v71, %v246
    %248 = vdwg.mxu0
    %249 = vmatpush.msra.mxu0 0.0
    %250 = vmatpush.msra.mxu0 0.0
    %251 = vmatpush.msra.mxu0 0.0
    %252 = vmatpush.msra.mxu0 0.0
    %253 = vmatpush.msra.mxu0 0.0
    %254 = vmatpush.msra.mxu0 0.0
    %255 = vmatpush.msra.mxu0 0.0
    %256 = vmatpush.msra.mxu0 0.0
    %257 = vmatpush.msra.mxu0 0.0
    %258 = vmatpush.msra.mxu0 0.0
    %259 = vmatpush.msra.mxu0 0.0
    %260 = vmatpush.msra.mxu0 %v62
    %261 = vmatpush.msra.mxu0 %v54
    %262 = vmatpush.msra.mxu0 %v46
    %263 = vmatpush.msra.mxu0 %v38
    %264 = vmatpush.msra.mxu0 %v30
    %265 = vmatmul.f32.gmra.mxu0 %v83
    %v266 = vpop.f32.mrf.mxu0
    %v267 = vadd.f32 %v72, %v266
    %268 = vmatmul.f32.gmra.mxu0 %v86
    %v269 = vpop.f32.mrf.mxu0
    %v270 = vadd.f32 %v72, %v269
    %271 = vdwg.mxu0
    %v272 = vmax.f32 %v106, 0.0
    %v273 = vmax.f32 %v129, 0.0
    %v274 = vmax.f32 %v152, 0.0
    %v275 = vmax.f32 %v175, 0.0
    %v276 = vmax.f32 %v198, 0.0
    %v277 = vmax.f32 %v221, 0.0
    %v278 = vmax.f32 %v244, 0.0
    %v279 = vmax.f32 %v267, 0.0
    %v280 = vmax.f32 %v109, 0.0
    %v281 = vmax.f32 %v132, 0.0
    %v282 = vmax.f32 %v155, 0.0
    %v283 = vmax.f32 %v178, 0.0
    %v284 = vmax.f32 %v201, 0.0
    %v285 = vmax.f32 %v224, 0.0
    %v286 = vmax.f32 %v247, 0.0
    %v287 = vmax.f32 %v270, 0.0
    %v288 = vld [vmem:[%s3] sm:$0xff]
    %v289 = vld [vmem:[%s3 + $0x8] sm:$0xff]
    %v290 = vld [vmem:[%s3 + $0x10] sm:$0xff]
    %v291 = vld [vmem:[%s3 + $0x18] sm:$0xff]
    %v292 = vld [vmem:[%s3 + $0x20] sm:$0xff]
    %v293 = vld [vmem:[%s3 + $0x28] sm:$0xff]
    %v294 = vld [vmem:[%s3 + $0x30] sm:$0xff]
    %v295 = vld [vmem:[%s3 + $0x38] sm:$0xff]
    %v296 = vld [vmem:[%s3 + $0x40] sm:$0xff]
    %v297 = vld [vmem:[%s3 + $0x48] sm:$0xff]
    %v298 = vld [vmem:[%s3 + $0x50] sm:$0xff]
    %v299 = vld [vmem:[%s3 + $0x58] sm:$0xff]
    %v300 = vld [vmem:[%s3 + $0x60] sm:$0xff]
    %v301 = vld [vmem:[%s3 + $0x68] sm:$0xff]
    %v302 = vld [vmem:[%s3 + $0x70] sm:$0xff]
    %v303 = vld [vmem:[%s3 + $0x78] sm:$0xff]
    %v304 = vld [vmem:[%s3 + $0x80] sm:$0xff]
    %v305 = vld [vmem:[%s3 + $0x88] sm:$0xff]
    %v306 = vld [vmem:[%s3 + $0x90] sm:$0xff]
    %v307 = vld [vmem:[%s3 + $0x98] sm:$0xff]
    %v308 = vld [vmem:[%s3 + $0xa0] sm:$0xff]
    %v309 = vld [vmem:[%s3 + $0xa8] sm:$0xff]
    %v310 = vld [vmem:[%s3 + $0xb0] sm:$0xff]
    %v311 = vld [vmem:[%s3 + $0xb8] sm:$0xff]
    %v312 = vld [vmem:[%s3 + $0xc0] sm:$0xff]
    %v313 = vld [vmem:[%s3 + $0xc8] sm:$0xff]
    %v314 = vld [vmem:[%s3 + $0xd0] sm:$0xff]
    %v315 = vld [vmem:[%s3 + $0xd8] sm:$0xff]
    %v316 = vld [vmem:[%s3 + $0xe0] sm:$0xff]
    %v317 = vld [vmem:[%s3 + $0xe8] sm:$0xff]
    %v318 = vld [vmem:[%s3 + $0xf0] sm:$0xff]
    %v319 = vld [vmem:[%s3 + $0xf8] sm:$0xff]
    %v320 = vld [vmem:[%s3 + $0x100] sm:$0xff]
    %v321 = vld [vmem:[%s3 + $0x108] sm:$0xff]
    %v322 = vld [vmem:[%s3 + $0x110] sm:$0xff]
    %v323 = vld [vmem:[%s3 + $0x118] sm:$0xff]
    %v324 = vld [vmem:[%s3 + $0x120] sm:$0xff]
    %v325 = vld [vmem:[%s3 + $0x128] sm:$0xff]
    %v326 = vld [vmem:[%s3 + $0x130] sm:$0xff]
    %v327 = vld [vmem:[%s3 + $0x138] sm:$0xff]
    %v328 = vld [vmem:[%s3 + $0x140] sm:$0xff]
    %v329 = vld [vmem:[%s3 + $0x148] sm:$0xff]
    %v330 = vld [vmem:[%s3 + $0x150] sm:$0xff]
    %v331 = vld [vmem:[%s3 + $0x158] sm:$0xff]
    %v332 = vld [vmem:[%s3 + $0x160] sm:$0xff]
    %v333 = vld [vmem:[%s3 + $0x168] sm:$0xff]
    %v334 = vld [vmem:[%s3 + $0x170] sm:$0xff]
    %v335 = vld [vmem:[%s3 + $0x178] sm:$0xff]
    %v336 = vld [vmem:[%s3 + $0x180] sm:$0xff]
    %v337 = vld [vmem:[%s3 + $0x188] sm:$0xff]
    %v338 = vld [vmem:[%s3 + $0x190] sm:$0xff]
    %v339 = vld [vmem:[%s3 + $0x198] sm:$0xff]
    %v340 = vld [vmem:[%s3 + $0x1a0] sm:$0xff]
    %v341 = vld [vmem:[%s3 + $0x1a8] sm:$0xff]
    %v342 = vld [vmem:[%s3 + $0x1b0] sm:$0xff]
    %v343 = vld [vmem:[%s3 + $0x1b8] sm:$0xff]
    %v344 = vld [vmem:[%s3 + $0x1c0] sm:$0xff]
    %v345 = vld [vmem:[%s3 + $0x1c8] sm:$0xff]
    %v346 = vld [vmem:[%s3 + $0x1d0] sm:$0xff]
    %v347 = vld [vmem:[%s3 + $0x1d8] sm:$0xff]
    %v348 = vld [vmem:[%s3 + $0x1e0] sm:$0xff]
    %v349 = vld [vmem:[%s3 + $0x1e8] sm:$0xff]
    %v350 = vld [vmem:[%s3 + $0x1f0] sm:$0xff]
    %v351 = vld [vmem:[%s3 + $0x1f8] sm:$0xff]
    %v352 = vld [vmem:[%s3 + $0x200] sm:$0xff]
    %v353 = vld [vmem:[%s3 + $0x208] sm:$0xff]
    %v354 = vld [vmem:[%s3 + $0x210] sm:$0xff]
    %v355 = vld [vmem:[%s3 + $0x218] sm:$0xff]
    %v356 = vld [vmem:[%s3 + $0x220] sm:$0xff]
    %v357 = vld [vmem:[%s3 + $0x228] sm:$0xff]
    %v358 = vld [vmem:[%s3 + $0x230] sm:$0xff]
    %v359 = vld [vmem:[%s3 + $0x238] sm:$0xff]
    %v360 = vld [vmem:[%s3 + $0x240] sm:$0xff]
    %v361 = vld [vmem:[%s3 + $0x248] sm:$0xff]
    %v362 = vld [vmem:[%s3 + $0x250] sm:$0xff]
    %v363 = vld [vmem:[%s3 + $0x258] sm:$0xff]
    %v364 = vld [vmem:[%s3 + $0x260] sm:$0xff]
    %v365 = vld [vmem:[%s3 + $0x268] sm:$0xff]
    %v366 = vld [vmem:[%s3 + $0x270] sm:$0xff]
    %v367 = vld [vmem:[%s3 + $0x278] sm:$0xff]
    %v368 = vld [vmem:[%s3 + $0x280] sm:$0xff]
    %v369 = vld [vmem:[%s3 + $0x288] sm:$0xff]
    %v370 = vld [vmem:[%s3 + $0x290] sm:$0xff]
    %v371 = vld [vmem:[%s3 + $0x298] sm:$0xff]
    %v372 = vld [vmem:[%s3 + $0x2a0] sm:$0xff]
    %v373 = vld [vmem:[%s3 + $0x2a8] sm:$0xff]
    %v374 = vld [vmem:[%s3 + $0x2b0] sm:$0xff]
    %v375 = vld [vmem:[%s3 + $0x2b8] sm:$0xff]
    %v376 = vld [vmem:[%s3 + $0x2c0] sm:$0xff]
    %v377 = vld [vmem:[%s3 + $0x2c8] sm:$0xff]
    %v378 = vld [vmem:[%s3 + $0x2d0] sm:$0xff]
    %v379 = vld [vmem:[%s3 + $0x2d8] sm:$0xff]
    %v380 = vld [vmem:[%s3 + $0x2e0] sm:$0xff]
    %v381 = vld [vmem:[%s3 + $0x2e8] sm:$0xff]
    %v382 = vld [vmem:[%s3 + $0x2f0] sm:$0xff]
    %v383 = vld [vmem:[%s3 + $0x2f8] sm:$0xff]
    %v384 = vld [vmem:[%s3 + $0x300] sm:$0xff]
    %v385 = vld [vmem:[%s3 + $0x308] sm:$0xff]
    %v386 = vld [vmem:[%s3 + $0x310] sm:$0xff]
    %v387 = vld [vmem:[%s3 + $0x318] sm:$0xff]
    %v388 = vld [vmem:[%s3 + $0x320] sm:$0xff]
    %v389 = vld [vmem:[%s3 + $0x328] sm:$0xff]
    %v390 = vld [vmem:[%s3 + $0x330] sm:$0xff]
    %v391 = vld [vmem:[%s3 + $0x338] sm:$0xff]
    %v392 = vld [vmem:[%s3 + $0x340] sm:$0xff]
    %v393 = vld [vmem:[%s3 + $0x348] sm:$0xff]
    %v394 = vld [vmem:[%s3 + $0x350] sm:$0xff]
    %v395 = vld [vmem:[%s3 + $0x358] sm:$0xff]
    %v396 = vld [vmem:[%s3 + $0x360] sm:$0xff]
    %v397 = vld [vmem:[%s3 + $0x368] sm:$0xff]
    %v398 = vld [vmem:[%s3 + $0x370] sm:$0xff]
    %v399 = vld [vmem:[%s3 + $0x378] sm:$0xff]
    %v400 = vld [vmem:[%s3 + $0x380] sm:$0xff]
    %v401 = vld [vmem:[%s3 + $0x388] sm:$0xff]
    %v402 = vld [vmem:[%s3 + $0x390] sm:$0xff]
    %v403 = vld [vmem:[%s3 + $0x398] sm:$0xff]
    %v404 = vld [vmem:[%s3 + $0x3a0] sm:$0xff]
    %v405 = vld [vmem:[%s3 + $0x3a8] sm:$0xff]
    %v406 = vld [vmem:[%s3 + $0x3b0] sm:$0xff]
    %v407 = vld [vmem:[%s3 + $0x3b8] sm:$0xff]
    %v408 = vld [vmem:[%s3 + $0x3c0] sm:$0xff]
    %v409 = vld [vmem:[%s3 + $0x3c8] sm:$0xff]
    %v410 = vld [vmem:[%s3 + $0x3d0] sm:$0xff]
    %v411 = vld [vmem:[%s3 + $0x3d8] sm:$0xff]
    %v412 = vld [vmem:[%s3 + $0x3e0] sm:$0xff]
    %v413 = vld [vmem:[%s3 + $0x3e8] sm:$0xff]
    %v414 = vld [vmem:[%s3 + $0x3f0] sm:$0xff]
    %v415 = vld [vmem:[%s3 + $0x3f8] sm:$0xff]
    %v416 = vld [vmem:[%s4] sm:$0x1]
    %v418 = vperm.slane %v416, 0
    %420 = vmatpush.msra.mxu0 %v303
    %421 = vmatpush.msra.mxu0 %v302
    %422 = vmatpush.msra.mxu0 %v301
    %423 = vmatpush.msra.mxu0 %v300
    %424 = vmatpush.msra.mxu0 %v299
    %425 = vmatpush.msra.mxu0 %v298
    %426 = vmatpush.msra.mxu0 %v297
    %427 = vmatpush.msra.mxu0 %v296
    %428 = vmatpush.msra.mxu0 %v295
    %429 = vmatpush.msra.mxu0 %v294
    %430 = vmatpush.msra.mxu0 %v293
    %431 = vmatpush.msra.mxu0 %v292
    %432 = vmatpush.msra.mxu0 %v291
    %433 = vmatpush.msra.mxu0 %v290
    %434 = vmatpush.msra.mxu0 %v289
    %435 = vmatpush.msra.mxu0 %v288
    %436 = vmatmul.f32.gmra.mxu0 %v272
    %v437 = vpop.f32.mrf.mxu0
    %v438 = vadd.f32 %v418, %v437
    %439 = vmatmul.f32.gmra.mxu0 %v280
    %v440 = vpop.f32.mrf.mxu0
    %v441 = vadd.f32 %v418, %v440
    %442 = vdwg.mxu0
    %443 = vmatpush.msra.mxu0 %v319
    %444 = vmatpush.msra.mxu0 %v318
    %445 = vmatpush.msra.mxu0 %v317
    %446 = vmatpush.msra.mxu0 %v316
    %447 = vmatpush.msra.mxu0 %v315
    %448 = vmatpush.msra.mxu0 %v314
    %449 = vmatpush.msra.mxu0 %v313
    %450 = vmatpush.msra.mxu0 %v312
    %451 = vmatpush.msra.mxu0 %v311
    %452 = vmatpush.msra.mxu0 %v310
    %453 = vmatpush.msra.mxu0 %v309
    %454 = vmatpush.msra.mxu0 %v308
    %455 = vmatpush.msra.mxu0 %v307
    %456 = vmatpush.msra.mxu0 %v306
    %457 = vmatpush.msra.mxu0 %v305
    %458 = vmatpush.msra.mxu0 %v304
    %459 = vmatmul.f32.gmra.mxu0 %v273
    %v460 = vpop.f32.mrf.mxu0
    %v461 = vadd.f32 %v438, %v460
    %462 = vmatmul.f32.gmra.mxu0 %v281
    %v463 = vpop.f32.mrf.mxu0
    %v464 = vadd.f32 %v441, %v463
    %465 = vdwg.mxu0
    %466 = vmatpush.msra.mxu0 %v335
    %467 = vmatpush.msra.mxu0 %v334
    %468 = vmatpush.msra.mxu0 %v333
    %469 = vmatpush.msra.mxu0 %v332
    %470 = vmatpush.msra.mxu0 %v331
    %471 = vmatpush.msra.mxu0 %v330
    %472 = vmatpush.msra.mxu0 %v329
    %473 = vmatpush.msra.mxu0 %v328
    %474 = vmatpush.msra.mxu0 %v327
    %475 = vmatpush.msra.mxu0 %v326
    %476 = vmatpush.msra.mxu0 %v325
    %477 = vmatpush.msra.mxu0 %v324
    %478 = vmatpush.msra.mxu0 %v323
    %479 = vmatpush.msra.mxu0 %v322
    %480 = vmatpush.msra.mxu0 %v321
    %481 = vmatpush.msra.mxu0 %v320
    %482 = vmatmul.f32.gmra.mxu0 %v274
    %v483 = vpop.f32.mrf.mxu0
    %v484 = vadd.f32 %v461, %v483
    %485 = vmatmul.f32.gmra.mxu0 %v282
    %v486 = vpop.f32.mrf.mxu0
    %v487 = vadd.f32 %v464, %v486
    %488 = vdwg.mxu0
    %489 = vmatpush.msra.mxu0 %v351
    %490 = vmatpush.msra.mxu0 %v350
    %491 = vmatpush.msra.mxu0 %v349
    %492 = vmatpush.msra.mxu0 %v348
    %493 = vmatpush.msra.mxu0 %v347
    %494 = vmatpush.msra.mxu0 %v346
    %495 = vmatpush.msra.mxu0 %v345
    %496 = vmatpush.msra.mxu0 %v344
    %497 = vmatpush.msra.mxu0 %v343
    %498 = vmatpush.msra.mxu0 %v342
    %499 = vmatpush.msra.mxu0 %v341
    %500 = vmatpush.msra.mxu0 %v340
    %501 = vmatpush.msra.mxu0 %v339
    %502 = vmatpush.msra.mxu0 %v338
    %503 = vmatpush.msra.mxu0 %v337
    %504 = vmatpush.msra.mxu0 %v336
    %505 = vmatmul.f32.gmra.mxu0 %v275
    %v506 = vpop.f32.mrf.mxu0
    %v507 = vadd.f32 %v484, %v506
    %508 = vmatmul.f32.gmra.mxu0 %v283
    %v509 = vpop.f32.mrf.mxu0
    %v510 = vadd.f32 %v487, %v509
    %511 = vdwg.mxu0
    %512 = vmatpush.msra.mxu0 %v367
    %513 = vmatpush.msra.mxu0 %v366
    %514 = vmatpush.msra.mxu0 %v365
    %515 = vmatpush.msra.mxu0 %v364
    %516 = vmatpush.msra.mxu0 %v363
    %517 = vmatpush.msra.mxu0 %v362
    %518 = vmatpush.msra.mxu0 %v361
    %519 = vmatpush.msra.mxu0 %v360
    %520 = vmatpush.msra.mxu0 %v359
    %521 = vmatpush.msra.mxu0 %v358
    %522 = vmatpush.msra.mxu0 %v357
    %523 = vmatpush.msra.mxu0 %v356
    %524 = vmatpush.msra.mxu0 %v355
    %525 = vmatpush.msra.mxu0 %v354
    %526 = vmatpush.msra.mxu0 %v353
    %527 = vmatpush.msra.mxu0 %v352
    %528 = vmatmul.f32.gmra.mxu0 %v276
    %v529 = vpop.f32.mrf.mxu0
    %v530 = vadd.f32 %v507, %v529
    %531 = vmatmul.f32.gmra.mxu0 %v284
    %v532 = vpop.f32.mrf.mxu0
    %v533 = vadd.f32 %v510, %v532
    %534 = vdwg.mxu0
    %535 = vmatpush.msra.mxu0 %v383
    %536 = vmatpush.msra.mxu0 %v382
    %537 = vmatpush.msra.mxu0 %v381
    %538 = vmatpush.msra.mxu0 %v380
    %539 = vmatpush.msra.mxu0 %v379
    %540 = vmatpush.msra.mxu0 %v378
    %541 = vmatpush.msra.mxu0 %v377
    %542 = vmatpush.msra.mxu0 %v376
    %543 = vmatpush.msra.mxu0 %v375
    %544 = vmatpush.msra.mxu0 %v374
    %545 = vmatpush.msra.mxu0 %v373
    %546 = vmatpush.msra.mxu0 %v372
    %547 = vmatpush.msra.mxu0 %v371
    %548 = vmatpush.msra.mxu0 %v370
    %549 = vmatpush.msra.mxu0 %v369
    %550 = vmatpush.msra.mxu0 %v368
    %551 = vmatmul.f32.gmra.mxu0 %v277
    %v552 = vpop.f32.mrf.mxu0
    %v553 = vadd.f32 %v530, %v552
    %554 = vmatmul.f32.gmra.mxu0 %v285
    %v555 = vpop.f32.mrf.mxu0
    %v556 = vadd.f32 %v533, %v555
    %557 = vdwg.mxu0
    %558 = vmatpush.msra.mxu0 %v399
    %559 = vmatpush.msra.mxu0 %v398
    %560 = vmatpush.msra.mxu0 %v397
    %561 = vmatpush.msra.mxu0 %v396
    %562 = vmatpush.msra.mxu0 %v395
    %563 = vmatpush.msra.mxu0 %v394
    %564 = vmatpush.msra.mxu0 %v393
    %565 = vmatpush.msra.mxu0 %v392
    %566 = vmatpush.msra.mxu0 %v391
    %567 = vmatpush.msra.mxu0 %v390
    %568 = vmatpush.msra.mxu0 %v389
    %569 = vmatpush.msra.mxu0 %v388
    %570 = vmatpush.msra.mxu0 %v387
    %571 = vmatpush.msra.mxu0 %v386
    %572 = vmatpush.msra.mxu0 %v385
    %573 = vmatpush.msra.mxu0 %v384
    %574 = vmatmul.f32.gmra.mxu0 %v278
    %v575 = vpop.f32.mrf.mxu0
    %v576 = vadd.f32 %v553, %v575
    %577 = vmatmul.f32.gmra.mxu0 %v286
    %v578 = vpop.f32.mrf.mxu0
    %v579 = vadd.f32 %v556, %v578
    %580 = vdwg.mxu0
    %581 = vmatpush.msra.mxu0 %v415
    %582 = vmatpush.msra.mxu0 %v414
    %583 = vmatpush.msra.mxu0 %v413
    %584 = vmatpush.msra.mxu0 %v412
    %585 = vmatpush.msra.mxu0 %v411
    %586 = vmatpush.msra.mxu0 %v410
    %587 = vmatpush.msra.mxu0 %v409
    %588 = vmatpush.msra.mxu0 %v408
    %589 = vmatpush.msra.mxu0 %v407
    %590 = vmatpush.msra.mxu0 %v406
    %591 = vmatpush.msra.mxu0 %v405
    %592 = vmatpush.msra.mxu0 %v404
    %593 = vmatpush.msra.mxu0 %v403
    %594 = vmatpush.msra.mxu0 %v402
    %595 = vmatpush.msra.mxu0 %v401
    %596 = vmatpush.msra.mxu0 %v400
    %597 = vmatmul.f32.gmra.mxu0 %v279
    %v598 = vpop.f32.mrf.mxu0
    %v599 = vadd.f32 %v576, %v598
    %600 = vmatmul.f32.gmra.mxu0 %v287
    %v601 = vpop.f32.mrf.mxu0
    %v602 = vadd.f32 %v579, %v601
    %603 = vdwg.mxu0
    %vm604 = vcmask 261120
    %605 = vst.msk [vmem:[#allocation2] sm:$0xff] %vm604, %v599
    %606 = vst.msk [vmem:[#allocation2 + $0x8] sm:$0xff] %vm604, %v602
    // Predicated region
    $region22: #{cnn_forward.3} parent=1 // pred_check
      _
    $region23: #{cnn_forward.3} parent=1 // pred_check_branch
      %608 = sbr.rel (0) target = $region25
    $region24: #{cnn_forward.3} parent=1 // pred_region
      %610 = vsyncadd [#allocation3], 0
      %s611 = sshll.u32 [#allocation2], 4
      %s612 = int_to_ptr.vmem [resolvable:$true] %s611
      %s613 = sshll.u32 %s5, 4
      %s614 = int_to_ptr.hbm [resolvable:$true] %s613
      %619 = dma.vmem_to_hbm [thread:$0]  %s612, 256, %s614, [#allocation3], 128, 128, 8
    $region25: #{cnn_forward.3} parent=1 // pred_fallthru
      _
    // Predicated region
    $region26: #{cnn_forward.3} parent=1 // pred_check
      _
    $region27: #{cnn_forward.3} parent=1 // pred_check_branch
      %621 = sbr.rel (0) target = $region29
    $region28: #{cnn_forward.3} parent=1 // pred_region
      %623 = dma.done [#allocation3], 256
    $region29: #{cnn_forward.3} parent=1 // pred_fallthru
      _
    %624 = vsyncpa [#allocation3], 1

</llo_original>
